<compile_context>
chip_gen: v6e
topology: v6e:2x2x1
jax: 0.10.0
libtpu: 0.0.40
codegen_flags: <defaults>
</compile_context>

<pallas_src>
import jax
import jax.numpy as jnp
import numpy as np
from jax.experimental import pallas as pl
from jax.experimental.pallas import tpu as pltpu

EPS = 1e-5  # F.layer_norm default eps, no affine params


def _round_up(x, m):
    return ((x + m - 1) // m) * m


def _layer_norm(x):
    mu = jnp.mean(x, axis=-1, keepdims=True)
    xc = x - mu
    var = jnp.mean(xc * xc, axis=-1, keepdims=True)
    return xc * jax.lax.rsqrt(var + EPS)


def _edge_update_kernel(edge_ref, idx_ref, w_edge_ref, nh_ref, nt_ref, b_ref,
                        out_ref):
    D = out_ref.shape[-1]
    te = edge_ref.shape[0]
    num_nodes = nh_ref.shape[0]
    mm_dt = nh_ref.dtype

    # In-kernel head/tail gather as one-hot matmuls (exact row selection of the
    # pre-projected node tables; MXU has plenty of slack at these sizes).
    # TODO(synk): for graphs where the one-hot (tile, N) operand gets large,
    # switch to a DMA-gather of node rows driven by scalar-prefetched indices.
    iota_n = jax.lax.broadcasted_iota(jnp.int32, (te, num_nodes), 1)
    oh_h = (idx_ref[:, 0:1] == iota_n).astype(mm_dt)   # (te, N)
    oh_t = (idx_ref[:, 1:2] == iota_n).astype(mm_dt)   # (te, N)

    # Every dot emits the full lane-aligned (te, 2D+1) = [ e | pre_mlp | pre_alpha ]
    # slab; f32 accumulation, f32 bias.
    pre = (jnp.dot(edge_ref[...], w_edge_ref[...],
                   preferred_element_type=jnp.float32)
           + jnp.dot(oh_h, nh_ref[...], preferred_element_type=jnp.float32)
           + jnp.dot(oh_t, nt_ref[...], preferred_element_type=jnp.float32)
           + b_ref[...])

    e = pre[:, :D]                                # initial_update(edge_fts)
    processed = jnp.tanh(pre[:, D:2 * D])
    alpha = jax.nn.sigmoid(pre[:, 2 * D:2 * D + 1])

    right = _layer_norm(processed) * alpha
    # NOTE: the output block spans the full D-wide row, so the HBM writeback
    # DMA is already dense; only the vreg->VMEM stores are lane-masked (D<128).
    # TODO(synk): optionally pack 128//D rows per 128-lane row (or emit bf16)
    # for fully lane-dense stores if the 32-lane vst cost ever shows up.
    out_ref[...] = _layer_norm(e + right).astype(out_ref.dtype)


def _choose_tile(num_rows, tile_e):
    # Big tiles amortize the ~0.35us per-grid-step overhead; cap so the grid
    # keeps >= 2 steps when possible (dual-TensorCore "parallel" sharding on
    # v7x).  Multiples of 16 keep bf16 sublane packing clean.
    num_rows = max(num_rows, 1)
    tile_e = max(16, min(_round_up(tile_e, 16), _round_up(num_rows, 16)))
    half = max(16, _round_up((num_rows + 1) // 2, 16))
    return min(tile_e, half)


def edge_update(node_fts, edge_fts, edges, fused, *, tile_e=4096,
                matmul_dtype=jnp.bfloat16, out_dtype=jnp.float32):
    E, edge_in = edge_fts.shape
    N = node_fts.shape[0]
    D = fused["dim"]
    F = 2 * D + 1

    # Tiny per-call node projections (N rows): the head/tail weights are folded
    # into these tables so the kernel's one-hot gather selects already-projected
    # rows and no (E, 2*node_in) intermediate ever touches HBM.
    hi = jax.lax.Precision.HIGHEST
    nh = jnp.dot(node_fts, fused["w_node_h"], precision=hi)   # (N, 2D+1)
    nt = jnp.dot(node_fts, fused["w_node_t"], precision=hi)   # (N, 2D+1)

    idx = edges.T.astype(jnp.int32)        # (E, 2): 8 B/row of index traffic

    te = _choose_tile(E, tile_e)
    grid = (pl.cdiv(E, te),)               # ragged last block handled by Pallas

    # bf16 matmul operands (default) halve input DMA bytes and use the bf16
    # MXU path; bias / tanh / sigmoid / layer-norms stay f32 inside the kernel.
    edge_k = edge_fts.astype(matmul_dtype)
    w_edge_k = fused["w_edge"].astype(matmul_dtype)
    nh_k = nh.astype(matmul_dtype)
    nt_k = nt.astype(matmul_dtype)
    b_full = fused["b_full"]               # f32, added post-accumulation

    return pl.pallas_call(
        _edge_update_kernel,
        out_shape=jax.ShapeDtypeStruct((E, D), out_dtype),
        grid_spec=pltpu.PrefetchScalarGridSpec(
            num_scalar_prefetch=0,
            grid=grid,
            in_specs=[
                pl.BlockSpec((te, edge_in), lambda i: (i, 0)),
                pl.BlockSpec((te, 2), lambda i: (i, 0)),
                pl.BlockSpec((edge_in, F), lambda i: (0, 0)),
                pl.BlockSpec((N, F), lambda i: (0, 0)),
                pl.BlockSpec((N, F), lambda i: (0, 0)),
                pl.BlockSpec((1, F), lambda i: (0, 0)),
            ],
            out_specs=pl.BlockSpec((te, D), lambda i: (i, 0)),
        ),
        compiler_params=pltpu.CompilerParams(
            dimension_semantics=("parallel",),
            vmem_limit_bytes=48 * 1024 * 1024,
        ),
    )(edge_k, idx, w_edge_k, nh_k, nt_k, b_full)


def init_params(key, node_in, edge_in, edge_out):
    """Raw PyTorch-style params: weights stored (in_features, out_features)."""
    ks = jax.random.split(key, 6)
    c_in = 2 * node_in + edge_out

    def unif(k, shape, fan_in):
        bound = 1.0 / np.sqrt(fan_in)
        return jax.random.uniform(k, shape, jnp.float32, -bound, bound)

    return dict(
        w_init=unif(ks[0], (edge_in, edge_out), edge_in),
        b_init=unif(ks[1], (1, edge_out), edge_in),
        w_mlp=unif(ks[2], (c_in, edge_out), c_in),      # rows: [e | head | tail]
        b_mlp=unif(ks[3], (1, edge_out), c_in),
        w_alpha=unif(ks[4], (c_in, 1), c_in),           # rows: [e | head | tail]
        b_alpha=unif(ks[5], (1, 1), c_in),
    )


def fuse_params(params):
    """One-time fusion of initial_update / mlp / alpha_mlp into kernel weights."""
    w_init, b_init = params["w_init"], params["b_init"]      # (edge_in, D), (1, D)
    w_mlp, b_mlp = params["w_mlp"], params["b_mlp"]          # (D+2*node_in, D), (1, D)
    w_alpha, b_alpha = params["w_alpha"], params["b_alpha"]  # (D+2*node_in, 1), (1, 1)
    D = w_init.shape[1]
    node_in = (w_mlp.shape[0] - D) // 2

    # Layout assertions (review): Linear weights stored (in, out) and the two
    # layer-norms are affine-free (F.layer_norm defaults).
    assert w_mlp.shape == (D + 2 * node_in, D)
    assert w_alpha.shape == (D + 2 * node_in, 1)
    assert b_init.shape == (1, D) and b_mlp.shape == (1, D) and b_alpha.shape == (1, 1)

    hi = jax.lax.Precision.HIGHEST
    w_mlp_e, w_mlp_h, w_mlp_t = (w_mlp[:D], w_mlp[D:D + node_in],
                                 w_mlp[D + node_in:])
    w_alpha_e, w_alpha_h, w_alpha_t = (w_alpha[:D], w_alpha[D:D + node_in],
                                       w_alpha[D + node_in:])

    # Fold initial_update into the edge-terms:
    #   e = x_e @ w_init + b_init
    #   e @ w_mlp_e = x_e @ (w_init @ w_mlp_e) + b_init @ w_mlp_e   (same for alpha)
    # Output column order everywhere: [ e (D) | pre_mlp (D) | pre_alpha (1) ].
    zeros_d = jnp.zeros((node_in, D), w_mlp.dtype)
    w_edge = jnp.concatenate(
        [w_init,
         jnp.dot(w_init, w_mlp_e, precision=hi),
         jnp.dot(w_init, w_alpha_e, precision=hi)], axis=1)            # (edge_in, 2D+1)
    w_node_h = jnp.concatenate([zeros_d, w_mlp_h, w_alpha_h], axis=1)  # (node_in, 2D+1)
    w_node_t = jnp.concatenate([zeros_d, w_mlp_t, w_alpha_t], axis=1)  # (node_in, 2D+1)
    b_full = jnp.concatenate(
        [b_init,
         b_mlp + jnp.dot(b_init, w_mlp_e, precision=hi),
         b_alpha + jnp.dot(b_init, w_alpha_e, precision=hi)], axis=1)  # (1, 2D+1)
    return dict(w_edge=w_edge, w_node_h=w_node_h, w_node_t=w_node_t,
                b_full=b_full, dim=D)


def edge_update_ref(node_fts, edge_fts, edges, params):
    """Pure-JAX reference matching the PyTorch forward exactly (unfused)."""
    e = edge_fts @ params["w_init"] + params["b_init"]
    h = node_fts[edges[0]]
    t = node_fts[edges[1]]
    combined = jnp.concatenate([e, h, t], axis=1)
    alpha = jax.nn.sigmoid(combined @ params["w_alpha"] + params["b_alpha"])
    processed = jnp.tanh(combined @ params["w_mlp"] + params["b_mlp"])
    right = _layer_norm(processed) * alpha
    return _layer_norm(e + right)


if __name__ == "__main__":
    node_in_fts, edge_in_fts, edge_out_fts = 16, 8, 32
    num_nodes, num_edges = 10, 200   # ragged edge count exercises the cdiv grid

    key = jax.random.PRNGKey(0)
    k_node, k_edge, k_idx, k_param = jax.random.split(key, 4)

    node_fts = jax.random.normal(k_node, (num_nodes, node_in_fts), jnp.float32)
    edge_fts = jax.random.normal(k_edge, (num_edges, edge_in_fts), jnp.float32)
    edges = jax.random.randint(k_idx, (2, num_edges), 0, num_nodes, jnp.int32)

    params = init_params(k_param, node_in_fts, edge_in_fts, edge_out_fts)
    fused = fuse_params(params)

    ref = edge_update_ref(node_fts, edge_fts, edges, params)

    # f32 matmul-operand path: tight per-element check against the reference.
    out_f32 = edge_update(node_fts, edge_fts, edges, fused,
                          matmul_dtype=jnp.float32)
    jax.block_until_ready(out_f32)
    np.testing.assert_allclose(np.asarray(out_f32), np.asarray(ref),
                               rtol=3e-4, atol=3e-4)

    # Default bf16 matmul-operand path (bandwidth optimization): per-element
    # check with a tolerance sized for bf16 operand rounding propagated
    # through two layer-norms.
    out_bf16 = edge_update(node_fts, edge_fts, edges, fused)
    jax.block_until_ready(out_bf16)
    np.testing.assert_allclose(np.asarray(out_bf16), np.asarray(ref),
                               rtol=0.03, atol=0.12)

    print("KERNEL_OK")
</pallas_src>

<mosaic_0001>
module attributes {stable_mosaic.version = 11 : i64} {
  func.func @_edge_update_kernel(%arg0: i32, %arg1: memref<112x8xf32, #tpu.memory_space<vmem>>, %arg2: memref<112x2xi32, #tpu.memory_space<vmem>>, %arg3: memref<8x65xf32, #tpu.memory_space<vmem>>, %arg4: memref<10x65xf32, #tpu.memory_space<vmem>>, %arg5: memref<10x65xf32, #tpu.memory_space<vmem>>, %arg6: memref<1x65xf32, #tpu.memory_space<vmem>>, %arg7: memref<112x32xf32, #tpu.memory_space<vmem>>) attributes {dimension_semantics = [#tpu.dimension_semantics<parallel>], iteration_bounds = array<i64: 2>, scalar_prefetch = 0 : i64, scratch_operands = 0 : i64, tpu.core_type = #tpu.core_type<tc>, window_params = [{transform_indices = @transform_0, window_bounds = array<i64: 112, 8>}, {transform_indices = @transform_1, window_bounds = array<i64: 112, 2>}, {pipeline_mode = #tpu.pipeline_mode<synchronous>, transform_indices = @transform_2, window_bounds = array<i64: 8, 65>}, {pipeline_mode = #tpu.pipeline_mode<synchronous>, transform_indices = @transform_3, window_bounds = array<i64: 10, 65>}, {pipeline_mode = #tpu.pipeline_mode<synchronous>, transform_indices = @transform_4, window_bounds = array<i64: 10, 65>}, {pipeline_mode = #tpu.pipeline_mode<synchronous>, transform_indices = @transform_5, window_bounds = array<i64: 1, 65>}, {transform_indices = @transform_6, window_bounds = array<i64: 112, 32>}]} {
    %0 = tpu.iota {dimensions = array<i32: 1>} : vector<112x10xi32>
    %c0 = arith.constant 0 : index
    %c0_0 = arith.constant 0 : index
    %1 = vector.load %arg2[%c0, %c0_0] : memref<112x2xi32, #tpu.memory_space<vmem>>, vector<112x1xi32>
    %2 = vector.broadcast %1 : vector<112x1xi32> to vector<112x10xi32>
    %3 = arith.cmpi eq, %2, %0 : vector<112x10xi32>
    %4 = arith.extui %3 : vector<112x10xi1> to vector<112x10xi32>
    %5 = arith.sitofp %4 : vector<112x10xi32> to vector<112x10xf32>
    %c0_1 = arith.constant 0 : index
    %c1 = arith.constant 1 : index
    %6 = vector.load %arg2[%c0_1, %c1] : memref<112x2xi32, #tpu.memory_space<vmem>>, vector<112x1xi32>
    %7 = vector.broadcast %6 : vector<112x1xi32> to vector<112x10xi32>
    %8 = arith.cmpi eq, %7, %0 : vector<112x10xi32>
    %9 = arith.extui %8 : vector<112x10xi1> to vector<112x10xi32>
    %10 = arith.sitofp %9 : vector<112x10xi32> to vector<112x10xf32>
    %c0_2 = arith.constant 0 : index
    %c0_3 = arith.constant 0 : index
    %11 = vector.load %arg1[%c0_2, %c0_3] : memref<112x8xf32, #tpu.memory_space<vmem>>, vector<112x8xf32>
    %c0_4 = arith.constant 0 : index
    %c0_5 = arith.constant 0 : index
    %12 = vector.load %arg3[%c0_4, %c0_5] : memref<8x65xf32, #tpu.memory_space<vmem>>, vector<8x65xf32>
    %cst = arith.constant dense<0.000000e+00> : vector<112x65xf32>
    %13 = tpu.matmul %11, %12, %cst {dimension_numbers = #tpu.dot_dimension_numbers<[1], [0], [0], [1], [0, 0, 1, 1], [], []>} : vector<112x8xf32>, vector<8x65xf32>, vector<112x65xf32> -> vector<112x65xf32>
    %c0_6 = arith.constant 0 : index
    %c0_7 = arith.constant 0 : index
    %14 = vector.load %arg4[%c0_6, %c0_7] : memref<10x65xf32, #tpu.memory_space<vmem>>, vector<10x65xf32>
    %cst_8 = arith.constant dense<0.000000e+00> : vector<112x65xf32>
    %15 = tpu.matmul %5, %14, %cst_8 {dimension_numbers = #tpu.dot_dimension_numbers<[1], [0], [0], [1], [0, 0, 1, 1], [], []>} : vector<112x10xf32>, vector<10x65xf32>, vector<112x65xf32> -> vector<112x65xf32>
    %16 = arith.addf %13, %15 : vector<112x65xf32>
    %c0_9 = arith.constant 0 : index
    %c0_10 = arith.constant 0 : index
    %17 = vector.load %arg5[%c0_9, %c0_10] : memref<10x65xf32, #tpu.memory_space<vmem>>, vector<10x65xf32>
    %cst_11 = arith.constant dense<0.000000e+00> : vector<112x65xf32>
    %18 = tpu.matmul %10, %17, %cst_11 {dimension_numbers = #tpu.dot_dimension_numbers<[1], [0], [0], [1], [0, 0, 1, 1], [], []>} : vector<112x10xf32>, vector<10x65xf32>, vector<112x65xf32> -> vector<112x65xf32>
    %19 = arith.addf %16, %18 : vector<112x65xf32>
    %c0_12 = arith.constant 0 : index
    %c0_13 = arith.constant 0 : index
    %20 = vector.load %arg6[%c0_12, %c0_13] : memref<1x65xf32, #tpu.memory_space<vmem>>, vector<1x65xf32>
    %21 = vector.broadcast %20 : vector<1x65xf32> to vector<112x65xf32>
    %22 = arith.addf %19, %21 : vector<112x65xf32>
    %23 = vector.extract_strided_slice %22 {offsets = [0, 0], sizes = [112, 32], strides = [1, 1]} : vector<112x65xf32> to vector<112x32xf32>
    %24 = vector.extract_strided_slice %22 {offsets = [0, 32], sizes = [112, 32], strides = [1, 1]} : vector<112x65xf32> to vector<112x32xf32>
    %25 = math.tanh %24 : vector<112x32xf32>
    %26 = vector.extract_strided_slice %22 {offsets = [0, 64], sizes = [112, 1], strides = [1, 1]} : vector<112x65xf32> to vector<112x1xf32>
    %27 = arith.negf %26 : vector<112x1xf32>
    %28 = math.exp %27 : vector<112x1xf32>
    %cst_14 = arith.constant 1.000000e+00 : f32
    %29 = vector.broadcast %cst_14 : f32 to vector<112x1xf32>
    %30 = arith.addf %29, %28 : vector<112x1xf32>
    %31 = arith.divf %29, %30 : vector<112x1xf32>
    %cst_15 = arith.constant dense<0.000000e+00> : vector<112xf32>
    %32 = vector.multi_reduction <add>, %25, %cst_15 [1] : vector<112x32xf32> to vector<112xf32>
    %33 = vector.shape_cast %32 : vector<112xf32> to vector<112x1xf32>
    %cst_16 = arith.constant 3.200000e+01 : f32
    %34 = vector.broadcast %cst_16 : f32 to vector<112x1xf32>
    %35 = arith.divf %33, %34 : vector<112x1xf32>
    %36 = vector.broadcast %35 : vector<112x1xf32> to vector<112x32xf32>
    %37 = arith.subf %25, %36 : vector<112x32xf32>
    %38 = arith.mulf %37, %37 : vector<112x32xf32>
    %cst_17 = arith.constant dense<0.000000e+00> : vector<112xf32>
    %39 = vector.multi_reduction <add>, %38, %cst_17 [1] : vector<112x32xf32> to vector<112xf32>
    %40 = vector.shape_cast %39 : vector<112xf32> to vector<112x1xf32>
    %cst_18 = arith.constant 3.200000e+01 : f32
    %41 = vector.broadcast %cst_18 : f32 to vector<112x1xf32>
    %42 = arith.divf %40, %41 : vector<112x1xf32>
    %cst_19 = arith.constant 9.99999974E-6 : f32
    %43 = vector.broadcast %cst_19 : f32 to vector<112x1xf32>
    %44 = arith.addf %42, %43 : vector<112x1xf32>
    %45 = math.rsqrt %44 : vector<112x1xf32>
    %46 = vector.broadcast %45 : vector<112x1xf32> to vector<112x32xf32>
    %47 = arith.mulf %37, %46 : vector<112x32xf32>
    %48 = vector.broadcast %31 : vector<112x1xf32> to vector<112x32xf32>
    %49 = arith.mulf %47, %48 : vector<112x32xf32>
    %50 = arith.addf %23, %49 : vector<112x32xf32>
    %cst_20 = arith.constant dense<0.000000e+00> : vector<112xf32>
    %51 = vector.multi_reduction <add>, %50, %cst_20 [1] : vector<112x32xf32> to vector<112xf32>
    %52 = vector.shape_cast %51 : vector<112xf32> to vector<112x1xf32>
    %cst_21 = arith.constant 3.200000e+01 : f32
    %53 = vector.broadcast %cst_21 : f32 to vector<112x1xf32>
    %54 = arith.divf %52, %53 : vector<112x1xf32>
    %55 = vector.broadcast %54 : vector<112x1xf32> to vector<112x32xf32>
    %56 = arith.subf %50, %55 : vector<112x32xf32>
    %57 = arith.mulf %56, %56 : vector<112x32xf32>
    %cst_22 = arith.constant dense<0.000000e+00> : vector<112xf32>
    %58 = vector.multi_reduction <add>, %57, %cst_22 [1] : vector<112x32xf32> to vector<112xf32>
    %59 = vector.shape_cast %58 : vector<112xf32> to vector<112x1xf32>
    %cst_23 = arith.constant 3.200000e+01 : f32
    %60 = vector.broadcast %cst_23 : f32 to vector<112x1xf32>
    %61 = arith.divf %59, %60 : vector<112x1xf32>
    %cst_24 = arith.constant 9.99999974E-6 : f32
    %62 = vector.broadcast %cst_24 : f32 to vector<112x1xf32>
    %63 = arith.addf %61, %62 : vector<112x1xf32>
    %64 = math.rsqrt %63 : vector<112x1xf32>
    %65 = vector.broadcast %64 : vector<112x1xf32> to vector<112x32xf32>
    %66 = arith.mulf %56, %65 : vector<112x32xf32>
    %c0_25 = arith.constant 0 : index
    %c0_26 = arith.constant 0 : index
    %67 = vector.load %arg7[%c0_25, %c0_26] : memref<112x32xf32, #tpu.memory_space<vmem>>, vector<112x32xf32>
    tpu.vector_store %arg7[%c0_25, %c0_26], %66 {strides = array<i32>} : memref<112x32xf32, #tpu.memory_space<vmem>>, vector<112x32xf32>,
    return
  }
  func.func @transform_0(%arg0: i32) -> (i32, i32) {
    %c0_i32 = arith.constant 0 : i32
    %c0_i32_0 = arith.constant 0 : i32
    return %arg0, %c0_i32 : i32, i32
  }
  func.func @transform_1(%arg0: i32) -> (i32, i32) {
    %c0_i32 = arith.constant 0 : i32
    %c0_i32_0 = arith.constant 0 : i32
    return %arg0, %c0_i32 : i32, i32
  }
  func.func @transform_2(%arg0: i32) -> (i32, i32) {
    %c0_i32 = arith.constant 0 : i32
    %c0_i32_0 = arith.constant 0 : i32
    %c0_i32_1 = arith.constant 0 : i32
    return %c0_i32, %c0_i32_0 : i32, i32
  }
  func.func @transform_3(%arg0: i32) -> (i32, i32) {
    %c0_i32 = arith.constant 0 : i32
    %c0_i32_0 = arith.constant 0 : i32
    %c0_i32_1 = arith.constant 0 : i32
    return %c0_i32, %c0_i32_0 : i32, i32
  }
  func.func @transform_4(%arg0: i32) -> (i32, i32) {
    %c0_i32 = arith.constant 0 : i32
    %c0_i32_0 = arith.constant 0 : i32
    %c0_i32_1 = arith.constant 0 : i32
    return %c0_i32, %c0_i32_0 : i32, i32
  }
  func.func @transform_5(%arg0: i32) -> (i32, i32) {
    %c0_i32 = arith.constant 0 : i32
    %c0_i32_0 = arith.constant 0 : i32
    %c0_i32_1 = arith.constant 0 : i32
    return %c0_i32, %c0_i32_0 : i32, i32
  }
  func.func @transform_6(%arg0: i32) -> (i32, i32) {
    %c0_i32 = arith.constant 0 : i32
    %c0_i32_0 = arith.constant 0 : i32
    return %arg0, %c0_i32 : i32, i32
  }
}

</mosaic_0001>

<llo_original>
// kernel: tpu_custom_call.1
$region0: #{tpu_custom_call.1}
  #allocation0 [shape = 'u32[]', space=smem, size = 0x4, offset = 0x4, fixed_abs, tag = 'smem constant byte address 0x4 - core index']
  #allocation1 [shape = 'u32[144,128]{1,0:T(1,128)}', space=vmem, size = 0x12000, scoped, tag = 'internal scratch']
  %s0 = inlined_call_operand.vmem [shape: f32[200,8], index: 0, kind: input, shape index: {}]
  %s1 = inlined_call_operand.vmem [shape: s32[200,2], index: 1, kind: input, shape index: {}]
  %s2 = inlined_call_operand.vmem [shape: f32[8,65], index: 2, kind: input, shape index: {}]
  %s3 = inlined_call_operand.vmem [shape: f32[10,65], index: 3, kind: input, shape index: {}]
  %s4 = inlined_call_operand.vmem [shape: f32[10,65], index: 4, kind: input, shape index: {}]
  %s5 = inlined_call_operand.vmem [shape: f32[1,65], index: 5, kind: input, shape index: {}]
  %s6 = inlined_call_operand.vmem [shape: f32[200,32], index: 6, kind: output, shape index: {}]
  %s7 = sld [smem:[#allocation0]]
  $region105: #{tpu_custom_call.1} parent=0
    _
  %s9 = ssub.s32 1, %s7
  %s10 = scalar_select 0, %s9, %s7
  $region1: #{tpu_custom_call.1} parent=0
    #allocation2 [shape = 'u8[114688]{0}', space=vmem, size = 0x1c000, scoped, tag = 'output window, operand 0']
    loop: start=0, step=1, limit=4
    $region2: #{tpu_custom_call.1} parent=1 // loop_pre_header
      _
    $region3: #{tpu_custom_call.1} parent=1 // loop_header
      %s12 = sphi 0, %s16
      %p13 = scmp.ge.s32.totalorder %s12, 4
      %s22 = sphi 0, %s24
      %s25 = sphi 0, %s22
      %s26 = sphi 0, %s25
      %s42 = sphi 0, %s26
      %s48 = sphi 0, %s50
      %s51 = sphi 0, %s48
      %s52 = sphi 0, %s51
      %s68 = sphi 0, %s52
      %s72 = sphi 0, %s72
      %s74 = sphi 0, %s72
      %s75 = sphi 0, %s74
      %s89 = sphi 0, %s75
      %s93 = sphi 0, %s93
      %s95 = sphi 0, %s93
      %s96 = sphi 0, %s95
      %s110 = sphi 0, %s96
      %s114 = sphi 0, %s114
      %s116 = sphi 0, %s114
      %s117 = sphi 0, %s116
      %s131 = sphi 0, %s117
      %s135 = sphi 0, %s135
      %s137 = sphi 0, %s135
      %s138 = sphi 0, %s137
      %s152 = sphi 0, %s138
      %s158 = sphi 0, %s160
      %s161 = sphi 0, %s158
      %s162 = sphi 0, %s161
      %s178 = sphi 0, %s162
    $region4: #{tpu_custom_call.1} parent=1 // loop_header_branch
      %15 = sbr.rel (%p13) target = $region8
    $region5: #{tpu_custom_call.1} parent=1 // loop_body
      %s17 = ssub.s32 %s12, 1
      %s18 = ssub.s32 %s12, 2
      %s19 = sadd.s32 %s12, 1
      %s20 = ssub.s32 %s12, %s19
      %p21 = scmp.eq.s32.totalorder %s20, 0
      %s23 = sadd.s32 %s22, 1
      %s24 = scalar_select %p21, %s22, %s23
      %p27 = pneg %p21
      %p28 = scmp.eq.s32.totalorder %s12, 1
      %p29 = por %p27, %p28
      %p30 = scmp.ne.s32.totalorder %s22, %s25
      %p31 = scmp.eq.s32.totalorder %s12, 0
      %p32 = por %p30, %p31
      %p33 = scmp.ne.s32.totalorder %s22, %s25
      %p34 = scmp.eq.s32.totalorder %s17, 1
      %p35 = por %p33, %p34
      %p36 = scmp.ne.s32.totalorder %s25, %s26
      %p37 = scmp.eq.s32.totalorder %s17, 0
      %p38 = por %p36, %p37
      %p39 = scmp.ne.s32.totalorder %s25, %s26
      %p40 = scmp.eq.s32.totalorder %s18, 1
      %p41 = por %p39, %p40
      %p43 = scmp.ne.s32.totalorder %s26, %s42
      %p44 = scmp.eq.s32.totalorder %s18, 0
      %p45 = por %p43, %p44
      %s46 = ssub.s32 %s12, %s19
      %p47 = scmp.eq.s32.totalorder %s46, 0
      %s49 = sadd.s32 %s48, 1
      %s50 = scalar_select %p47, %s48, %s49
      %p53 = pneg %p47
      %p54 = scmp.eq.s32.totalorder %s12, 1
      %p55 = por %p53, %p54
      %p56 = scmp.ne.s32.totalorder %s48, %s51
      %p57 = scmp.eq.s32.totalorder %s12, 0
      %p58 = por %p56, %p57
      %p59 = scmp.ne.s32.totalorder %s48, %s51
      %p60 = scmp.eq.s32.totalorder %s17, 1
      %p61 = por %p59, %p60
      %p62 = scmp.ne.s32.totalorder %s51, %s52
      %p63 = scmp.eq.s32.totalorder %s17, 0
      %p64 = por %p62, %p63
      %p65 = scmp.ne.s32.totalorder %s51, %s52
      %p66 = scmp.eq.s32.totalorder %s18, 1
      %p67 = por %p65, %p66
      %p69 = scmp.ne.s32.totalorder %s52, %s68
      %p70 = scmp.eq.s32.totalorder %s18, 0
      %p71 = por %p69, %p70
      %s73 = sadd.s32 %s72, 1
      %p76 = scmp.eq.s32.totalorder %s12, 1
      %p77 = scmp.ne.s32.totalorder %s72, %s74
      %p78 = scmp.eq.s32.totalorder %s12, 0
      %p79 = por %p77, %p78
      %p80 = scmp.ne.s32.totalorder %s72, %s74
      %p81 = scmp.eq.s32.totalorder %s17, 1
      %p82 = por %p80, %p81
      %p83 = scmp.ne.s32.totalorder %s74, %s75
      %p84 = scmp.eq.s32.totalorder %s17, 0
      %p85 = por %p83, %p84
      %p86 = scmp.ne.s32.totalorder %s74, %s75
      %p87 = scmp.eq.s32.totalorder %s18, 1
      %p88 = por %p86, %p87
      %p90 = scmp.ne.s32.totalorder %s75, %s89
      %p91 = scmp.eq.s32.totalorder %s18, 0
      %p92 = por %p90, %p91
      %s94 = sadd.s32 %s93, 1
      %p97 = scmp.eq.s32.totalorder %s12, 1
      %p98 = scmp.ne.s32.totalorder %s93, %s95
      %p99 = scmp.eq.s32.totalorder %s12, 0
      %p100 = por %p98, %p99
      %p101 = scmp.ne.s32.totalorder %s93, %s95
      %p102 = scmp.eq.s32.totalorder %s17, 1
      %p103 = por %p101, %p102
      %p104 = scmp.ne.s32.totalorder %s95, %s96
      %p105 = scmp.eq.s32.totalorder %s17, 0
      %p106 = por %p104, %p105
      %p107 = scmp.ne.s32.totalorder %s95, %s96
      %p108 = scmp.eq.s32.totalorder %s18, 1
      %p109 = por %p107, %p108
      %p111 = scmp.ne.s32.totalorder %s96, %s110
      %p112 = scmp.eq.s32.totalorder %s18, 0
      %p113 = por %p111, %p112
      %s115 = sadd.s32 %s114, 1
      %p118 = scmp.eq.s32.totalorder %s12, 1
      %p119 = scmp.ne.s32.totalorder %s114, %s116
      %p120 = scmp.eq.s32.totalorder %s12, 0
      %p121 = por %p119, %p120
      %p122 = scmp.ne.s32.totalorder %s114, %s116
      %p123 = scmp.eq.s32.totalorder %s17, 1
      %p124 = por %p122, %p123
      %p125 = scmp.ne.s32.totalorder %s116, %s117
      %p126 = scmp.eq.s32.totalorder %s17, 0
      %p127 = por %p125, %p126
      %p128 = scmp.ne.s32.totalorder %s116, %s117
      %p129 = scmp.eq.s32.totalorder %s18, 1
      %p130 = por %p128, %p129
      %p132 = scmp.ne.s32.totalorder %s117, %s131
      %p133 = scmp.eq.s32.totalorder %s18, 0
      %p134 = por %p132, %p133
      %s136 = sadd.s32 %s135, 1
      %p139 = scmp.eq.s32.totalorder %s12, 1
      %p140 = scmp.ne.s32.totalorder %s135, %s137
      %p141 = scmp.eq.s32.totalorder %s12, 0
      %p142 = por %p140, %p141
      %p143 = scmp.ne.s32.totalorder %s135, %s137
      %p144 = scmp.eq.s32.totalorder %s17, 1
      %p145 = por %p143, %p144
      %p146 = scmp.ne.s32.totalorder %s137, %s138
      %p147 = scmp.eq.s32.totalorder %s17, 0
      %p148 = por %p146, %p147
      %p149 = scmp.ne.s32.totalorder %s137, %s138
      %p150 = scmp.eq.s32.totalorder %s18, 1
      %p151 = por %p149, %p150
      %p153 = scmp.ne.s32.totalorder %s138, %s152
      %p154 = scmp.eq.s32.totalorder %s18, 0
      %p155 = por %p153, %p154
      %s156 = ssub.s32 %s12, %s19
      %p157 = scmp.eq.s32.totalorder %s156, 0
      %s159 = sadd.s32 %s158, 1
      %s160 = scalar_select %p157, %s158, %s159
      %p163 = pneg %p157
      %p164 = scmp.eq.s32.totalorder %s12, 1
      %p165 = por %p163, %p164
      %p166 = scmp.ne.s32.totalorder %s158, %s161
      %p167 = scmp.eq.s32.totalorder %s12, 0
      %p168 = por %p166, %p167
      %p169 = scmp.ne.s32.totalorder %s158, %s161
      %p170 = scmp.eq.s32.totalorder %s17, 1
      %p171 = por %p169, %p170
      %p172 = scmp.ne.s32.totalorder %s161, %s162
      %p173 = scmp.eq.s32.totalorder %s17, 0
      %p174 = por %p172, %p173
      %p175 = scmp.ne.s32.totalorder %s161, %s162
      %p176 = scmp.eq.s32.totalorder %s18, 1
      %p177 = por %p175, %p176
      %p179 = scmp.ne.s32.totalorder %s162, %s178
      %p180 = scmp.eq.s32.totalorder %s18, 0
      %p181 = por %p179, %p180
      %p182 = scmp.le.s32.totalorder 1, %s12
      %p183 = scmp.lt.s32.totalorder %s12, 3
      %p184 = pnand %p182, %p183
      %p185 = pneg %p184
      // Predicated region
      $region9: #{tpu_custom_call.1} parent=5 // pred_check
        _
      $region10: #{tpu_custom_call.1} parent=5 // pred_check_branch
        %187 = sbr.rel (%p184) target = $region12
      $region11: #{tpu_custom_call.1} parent=5 // pred_region
        %s188 = ssub.s32 %s12, 1
        // Predicated region
        $region13: #{tpu_custom_call.1} parent=11 // pred_check
          %p189 = pneg %p85
        $region14: #{tpu_custom_call.1} parent=11 // pred_check_branch
          %191 = sbr.rel (%p189) target = $region16
        $region15: #{tpu_custom_call.1} parent=11 // pred_region
          _
        $region16: #{tpu_custom_call.1} parent=11 // pred_fallthru
          _
        // Predicated region
        $region17: #{tpu_custom_call.1} parent=11 // pred_check
          %p192 = pneg %p106
        $region18: #{tpu_custom_call.1} parent=11 // pred_check_branch
          %194 = sbr.rel (%p192) target = $region20
        $region19: #{tpu_custom_call.1} parent=11 // pred_region
          _
        $region20: #{tpu_custom_call.1} parent=11 // pred_fallthru
          _
        // Predicated region
        $region21: #{tpu_custom_call.1} parent=11 // pred_check
          %p195 = pneg %p127
        $region22: #{tpu_custom_call.1} parent=11 // pred_check_branch
          %197 = sbr.rel (%p195) target = $region24
        $region23: #{tpu_custom_call.1} parent=11 // pred_region
          _
        $region24: #{tpu_custom_call.1} parent=11 // pred_fallthru
          _
        // Predicated region
        $region25: #{tpu_custom_call.1} parent=11 // pred_check
          %p198 = pneg %p148
        $region26: #{tpu_custom_call.1} parent=11 // pred_check_branch
          %200 = sbr.rel (%p198) target = $region28
        $region27: #{tpu_custom_call.1} parent=11 // pred_region
          _
        $region28: #{tpu_custom_call.1} parent=11 // pred_fallthru
          _
      $region12: #{tpu_custom_call.1} parent=5 // pred_fallthru
        _
      %p201 = scmp.lt.s32.totalorder %s12, 2
      // Predicated region
      $region29: #{tpu_custom_call.1} parent=5 // pred_check
        %p202 = pneg %p201
      $region30: #{tpu_custom_call.1} parent=5 // pred_check_branch
        %204 = sbr.rel (%p202) target = $region32
      $region31: #{tpu_custom_call.1} parent=5 // pred_region
        // Predicated region
        $region33: #{tpu_custom_call.1} parent=31 // pred_check
          %p205 = pneg %p32
        $region34: #{tpu_custom_call.1} parent=31 // pred_check_branch
          %207 = sbr.rel (%p205) target = $region36
        $region35: #{tpu_custom_call.1} parent=31 // pred_region
          %s208 = smul.u32 14, %s12
          %s209 = ssub.s32 25, %s208
          %p210 = scmp.lt.s32.totalorder %s209, 14
          %s211 = scalar_select %p210, %s209, 14
          %s212 = smul.u32 128, %s211
          %p213 = scmp.lt.s32.totalorder %s208, 24
          %s214 = scalar_select %p213, %s208, 24
          %s215 = smul.addr %s214, 8
          %s216 = scalar_lea.vmem %s0, %s215
          %s217 = smul.u32 14, %s12
          %s218 = ssub.s32 25, %s217
          %p219 = scmp.lt.s32.totalorder %s218, 14
          %s220 = scalar_select %p219, %s218, 14
          %s221 = smul.u32 128, %s220
        $region36: #{tpu_custom_call.1} parent=31 // pred_fallthru
          _
        // Predicated region
        $region37: #{tpu_custom_call.1} parent=31 // pred_check
          %p222 = pneg %p58
        $region38: #{tpu_custom_call.1} parent=31 // pred_check_branch
          %224 = sbr.rel (%p222) target = $region40
        $region39: #{tpu_custom_call.1} parent=31 // pred_region
          %s225 = smul.u32 14, %s12
          %s226 = ssub.s32 25, %s225
          %p227 = scmp.lt.s32.totalorder %s226, 14
          %s228 = scalar_select %p227, %s226, 14
          %s229 = smul.u32 128, %s228
          %p230 = scmp.lt.s32.totalorder %s225, 24
          %s231 = scalar_select %p230, %s225, 24
          %s232 = smul.addr %s231, 8
          %s233 = scalar_lea.vmem %s1, %s232
          %s234 = smul.u32 14, %s12
          %s235 = ssub.s32 25, %s234
          %p236 = scmp.lt.s32.totalorder %s235, 14
          %s237 = scalar_select %p236, %s235, 14
          %s238 = smul.u32 128, %s237
        $region40: #{tpu_custom_call.1} parent=31 // pred_fallthru
          _
      $region32: #{tpu_custom_call.1} parent=5 // pred_fallthru
        _
      %p239 = scmp.le.s32.totalorder 1, %s12
      %p240 = scmp.lt.s32.totalorder %s12, 3
      %p241 = pnand %p239, %p240
      %p242 = pneg %p241
      // Predicated region
      $region41: #{tpu_custom_call.1} parent=5 // pred_check
        _
      $region42: #{tpu_custom_call.1} parent=5 // pred_check_branch
        %244 = sbr.rel (%p241) target = $region44
      $region43: #{tpu_custom_call.1} parent=5 // pred_region
        %s245 = ssub.s32 %s12, 1
        %s246 = smul.u32 14, %s17
        %s247 = ssub.s32 25, %s246
        %p248 = scmp.lt.s32.totalorder %s247, 14
        %s249 = scalar_select %p248, %s247, 14
        %s250 = smul.u32 128, %s249
        %p251 = scmp.lt.s32.totalorder %s246, 24
        %s252 = scalar_select %p251, %s246, 24
        %s253 = smul.addr %s252, 8
        %s254 = scalar_lea.vmem %s0, %s253
        %p255 = pneg %p38
        %p256 = pneg %p35
        %s257 = smul.u32 14, %s17
        %s258 = ssub.s32 25, %s257
        %p259 = scmp.lt.s32.totalorder %s258, 14
        %s260 = scalar_select %p259, %s258, 14
        %s261 = smul.u32 128, %s260
        %p262 = scmp.lt.s32.totalorder %s257, 24
        %s263 = scalar_select %p262, %s257, 24
        %s264 = smul.addr %s263, 8
        %s265 = scalar_lea.vmem %s1, %s264
        %p266 = pneg %p64
        %p267 = pneg %p61
        %p268 = pneg %p85
        %p269 = pneg %p82
        %p270 = pneg %p106
        %p271 = pneg %p103
        %p272 = pneg %p127
        %p273 = pneg %p124
        %p274 = pneg %p148
        %p275 = pneg %p145
        %p276 = pneg %p174
        %p277 = pneg %p171
        %s278 = sand.u32 %s161, 1
        %s279 = sand.u32 %s161, 1
        %s280 = smul.addr %s279, 112
        %s281 = scalar_lea.vmem [#allocation2], %s280
        %s282 = smul.u32 14, %s17
        %s283 = ssub.s32 25, %s282
        %p284 = scmp.lt.s32.totalorder %s283, 14
        %s285 = scalar_select %p284, %s283, 14
        %s286 = smul.u32 128, %s285
        %p287 = scmp.lt.s32.totalorder %s282, 24
        %s288 = scalar_select %p287, %s282, 24
        %s289 = smul.addr %s288, 8
        %s290 = scalar_lea.vmem %s0, %s289
        %s291 = smul.u32 14, %s17
        %s292 = ssub.s32 25, %s291
        %p293 = scmp.lt.s32.totalorder %s292, 14
        %s294 = scalar_select %p293, %s292, 14
        %s295 = smul.u32 128, %s294
        %s296 = smul.u32 14, %s17
        %s297 = ssub.s32 25, %s296
        %p298 = scmp.lt.s32.totalorder %s297, 14
        %s299 = scalar_select %p298, %s297, 14
        %s300 = smul.u32 128, %s299
        %p301 = scmp.lt.s32.totalorder %s296, 24
        %s302 = scalar_select %p301, %s296, 24
        %s303 = smul.addr %s302, 8
        %s304 = scalar_lea.vmem %s1, %s303
        %s305 = smul.u32 14, %s17
        %s306 = ssub.s32 25, %s305
        %p307 = scmp.lt.s32.totalorder %s306, 14
        %s308 = scalar_select %p307, %s306, 14
        %s309 = smul.u32 128, %s308
        %s310 = smul.u32 14, %s17
        %s311 = ssub.s32 25, %s310
        %p312 = scmp.lt.s32.totalorder %s311, 14
        %s313 = scalar_select %p312, %s311, 14
        %s314 = smul.u32 128, %s313
        %v315 = vlaneseq
        %v316 = vand.u32 %v315, 127
        %v317 = vld [vmem:[%s304] sm:$0xff]
        %v318 = vld [vmem:[%s304 + $0x8] sm:$0xff]
        %v319 = vld [vmem:[%s304 + $0x10] sm:$0xff]
        %v320 = vld [vmem:[%s304 + $0x18] sm:$0xff]
        %v321 = vld [vmem:[%s304 + $0x20] sm:$0xff]
        %v322 = vld [vmem:[%s304 + $0x28] sm:$0xff]
        %v323 = vld [vmem:[%s304 + $0x30] sm:$0xff]
        %v324 = vld [vmem:[%s304 + $0x38] sm:$0xff]
        %v325 = vld [vmem:[%s304 + $0x40] sm:$0xff]
        %v326 = vld [vmem:[%s304 + $0x48] sm:$0xff]
        %v327 = vld [vmem:[%s304 + $0x50] sm:$0xff]
        %v328 = vld [vmem:[%s304 + $0x58] sm:$0xff]
        %v329 = vld [vmem:[%s304 + $0x60] sm:$0xff]
        %v330 = vld [vmem:[%s304 + $0x68] sm:$0xff]
        %331 = vset.pattern.permute.xlu0 0
        %332 = vperm.xlu0 %331, %v317
        %v333 = vpop.permute.xlu0 %332
        %334 = vset.pattern.permute.xlu0 0
        %335 = vperm.xlu0 %334, %v318
        %v336 = vpop.permute.xlu0 %335
        %337 = vset.pattern.permute.xlu0 0
        %338 = vperm.xlu0 %337, %v319
        %v339 = vpop.permute.xlu0 %338
        %340 = vset.pattern.permute.xlu0 0
        %341 = vperm.xlu0 %340, %v320
        %v342 = vpop.permute.xlu0 %341
        %343 = vset.pattern.permute.xlu0 0
        %344 = vperm.xlu0 %343, %v321
        %v345 = vpop.permute.xlu0 %344
        %346 = vset.pattern.permute.xlu0 0
        %347 = vperm.xlu0 %346, %v322
        %v348 = vpop.permute.xlu0 %347
        %349 = vset.pattern.permute.xlu0 0
        %350 = vperm.xlu0 %349, %v323
        %v351 = vpop.permute.xlu0 %350
        %352 = vset.pattern.permute.xlu0 0
        %353 = vperm.xlu0 %352, %v324
        %v354 = vpop.permute.xlu0 %353
        %355 = vset.pattern.permute.xlu0 0
        %356 = vperm.xlu0 %355, %v325
        %v357 = vpop.permute.xlu0 %356
        %358 = vset.pattern.permute.xlu0 0
        %359 = vperm.xlu0 %358, %v326
        %v360 = vpop.permute.xlu0 %359
        %361 = vset.pattern.permute.xlu0 0
        %362 = vperm.xlu0 %361, %v327
        %v363 = vpop.permute.xlu0 %362
        %364 = vset.pattern.permute.xlu0 0
        %365 = vperm.xlu0 %364, %v328
        %v366 = vpop.permute.xlu0 %365
        %367 = vset.pattern.permute.xlu0 0
        %368 = vperm.xlu0 %367, %v329
        %v369 = vpop.permute.xlu0 %368
        %370 = vset.pattern.permute.xlu0 0
        %371 = vperm.xlu0 %370, %v330
        %v372 = vpop.permute.xlu0 %371
        %vm373 = vcmp.eq.s32.totalorder %v333, %v316
        %vm374 = vcmp.eq.s32.totalorder %v336, %v316
        %vm375 = vcmp.eq.s32.totalorder %v339, %v316
        %vm376 = vcmp.eq.s32.totalorder %v342, %v316
        %vm377 = vcmp.eq.s32.totalorder %v345, %v316
        %vm378 = vcmp.eq.s32.totalorder %v348, %v316
        %vm379 = vcmp.eq.s32.totalorder %v351, %v316
        %vm380 = vcmp.eq.s32.totalorder %v354, %v316
        %vm381 = vcmp.eq.s32.totalorder %v357, %v316
        %vm382 = vcmp.eq.s32.totalorder %v360, %v316
        %vm383 = vcmp.eq.s32.totalorder %v363, %v316
        %vm384 = vcmp.eq.s32.totalorder %v366, %v316
        %vm385 = vcmp.eq.s32.totalorder %v369, %v316
        %vm386 = vcmp.eq.s32.totalorder %v372, %v316
        %v387 = vsel %vm373, 1, 0
        %v388 = vsel %vm374, 1, 0
        %v389 = vsel %vm375, 1, 0
        %v390 = vsel %vm376, 1, 0
        %v391 = vsel %vm377, 1, 0
        %v392 = vsel %vm378, 1, 0
        %v393 = vsel %vm379, 1, 0
        %v394 = vsel %vm380, 1, 0
        %v395 = vsel %vm381, 1, 0
        %v396 = vsel %vm382, 1, 0
        %v397 = vsel %vm383, 1, 0
        %v398 = vsel %vm384, 1, 0
        %v399 = vsel %vm385, 1, 0
        %v400 = vsel %vm386, 1, 0
        %v401 = vcvt.s32.f32 %v387
        %v402 = vcvt.s32.f32 %v388
        %v403 = vcvt.s32.f32 %v389
        %v404 = vcvt.s32.f32 %v390
        %v405 = vcvt.s32.f32 %v391
        %v406 = vcvt.s32.f32 %v392
        %v407 = vcvt.s32.f32 %v393
        %v408 = vcvt.s32.f32 %v394
        %v409 = vcvt.s32.f32 %v395
        %v410 = vcvt.s32.f32 %v396
        %v411 = vcvt.s32.f32 %v397
        %v412 = vcvt.s32.f32 %v398
        %v413 = vcvt.s32.f32 %v399
        %v414 = vcvt.s32.f32 %v400
        %415 = vset.pattern.permute.xlu0 1
        %416 = vperm.xlu0 %415, %v317
        %v417 = vpop.permute.xlu0 %416
        %418 = vset.pattern.permute.xlu0 1
        %419 = vperm.xlu0 %418, %v318
        %v420 = vpop.permute.xlu0 %419
        %421 = vset.pattern.permute.xlu0 1
        %422 = vperm.xlu0 %421, %v319
        %v423 = vpop.permute.xlu0 %422
        %424 = vset.pattern.permute.xlu0 1
        %425 = vperm.xlu0 %424, %v320
        %v426 = vpop.permute.xlu0 %425
        %427 = vset.pattern.permute.xlu0 1
        %428 = vperm.xlu0 %427, %v321
        %v429 = vpop.permute.xlu0 %428
        %430 = vset.pattern.permute.xlu0 1
        %431 = vperm.xlu0 %430, %v322
        %v432 = vpop.permute.xlu0 %431
        %433 = vset.pattern.permute.xlu0 1
        %434 = vperm.xlu0 %433, %v323
        %v435 = vpop.permute.xlu0 %434
        %436 = vset.pattern.permute.xlu0 1
        %437 = vperm.xlu0 %436, %v324
        %v438 = vpop.permute.xlu0 %437
        %439 = vset.pattern.permute.xlu0 1
        %440 = vperm.xlu0 %439, %v325
        %v441 = vpop.permute.xlu0 %440
        %442 = vset.pattern.permute.xlu0 1
        %443 = vperm.xlu0 %442, %v326
        %v444 = vpop.permute.xlu0 %443
        %445 = vset.pattern.permute.xlu0 1
        %446 = vperm.xlu0 %445, %v327
        %v447 = vpop.permute.xlu0 %446
        %448 = vset.pattern.permute.xlu0 1
        %449 = vperm.xlu0 %448, %v328
        %v450 = vpop.permute.xlu0 %449
        %451 = vset.pattern.permute.xlu0 1
        %452 = vperm.xlu0 %451, %v329
        %v453 = vpop.permute.xlu0 %452
        %454 = vset.pattern.permute.xlu0 1
        %455 = vperm.xlu0 %454, %v330
        %v456 = vpop.permute.xlu0 %455
        %vm457 = vcmp.eq.s32.totalorder %v417, %v316
        %vm458 = vcmp.eq.s32.totalorder %v420, %v316
        %vm459 = vcmp.eq.s32.totalorder %v423, %v316
        %vm460 = vcmp.eq.s32.totalorder %v426, %v316
        %vm461 = vcmp.eq.s32.totalorder %v429, %v316
        %vm462 = vcmp.eq.s32.totalorder %v432, %v316
        %vm463 = vcmp.eq.s32.totalorder %v435, %v316
        %vm464 = vcmp.eq.s32.totalorder %v438, %v316
        %vm465 = vcmp.eq.s32.totalorder %v441, %v316
        %vm466 = vcmp.eq.s32.totalorder %v444, %v316
        %vm467 = vcmp.eq.s32.totalorder %v447, %v316
        %vm468 = vcmp.eq.s32.totalorder %v450, %v316
        %vm469 = vcmp.eq.s32.totalorder %v453, %v316
        %vm470 = vcmp.eq.s32.totalorder %v456, %v316
        %v471 = vsel %vm457, 1, 0
        %v472 = vsel %vm458, 1, 0
        %v473 = vsel %vm459, 1, 0
        %v474 = vsel %vm460, 1, 0
        %v475 = vsel %vm461, 1, 0
        %v476 = vsel %vm462, 1, 0
        %v477 = vsel %vm463, 1, 0
        %v478 = vsel %vm464, 1, 0
        %v479 = vsel %vm465, 1, 0
        %v480 = vsel %vm466, 1, 0
        %v481 = vsel %vm467, 1, 0
        %v482 = vsel %vm468, 1, 0
        %v483 = vsel %vm469, 1, 0
        %v484 = vsel %vm470, 1, 0
        %v485 = vcvt.s32.f32 %v471
        %v486 = vcvt.s32.f32 %v472
        %v487 = vcvt.s32.f32 %v473
        %v488 = vcvt.s32.f32 %v474
        %v489 = vcvt.s32.f32 %v475
        %v490 = vcvt.s32.f32 %v476
        %v491 = vcvt.s32.f32 %v477
        %v492 = vcvt.s32.f32 %v478
        %v493 = vcvt.s32.f32 %v479
        %v494 = vcvt.s32.f32 %v480
        %v495 = vcvt.s32.f32 %v481
        %v496 = vcvt.s32.f32 %v482
        %v497 = vcvt.s32.f32 %v483
        %v498 = vcvt.s32.f32 %v484
        %v499 = vld [vmem:[%s290] sm:$0xff]
        %v500 = vld [vmem:[%s290 + $0x8] sm:$0xff]
        %v501 = vld [vmem:[%s290 + $0x10] sm:$0xff]
        %v502 = vld [vmem:[%s290 + $0x18] sm:$0xff]
        %v503 = vld [vmem:[%s290 + $0x20] sm:$0xff]
        %v504 = vld [vmem:[%s290 + $0x28] sm:$0xff]
        %v505 = vld [vmem:[%s290 + $0x30] sm:$0xff]
        %v506 = vld [vmem:[%s290 + $0x38] sm:$0xff]
        %v507 = vld [vmem:[%s290 + $0x40] sm:$0xff]
        %v508 = vld [vmem:[%s290 + $0x48] sm:$0xff]
        %v509 = vld [vmem:[%s290 + $0x50] sm:$0xff]
        %v510 = vld [vmem:[%s290 + $0x58] sm:$0xff]
        %v511 = vld [vmem:[%s290 + $0x60] sm:$0xff]
        %v512 = vld [vmem:[%s290 + $0x68] sm:$0xff]
        %v513 = vld [vmem:[%s2] sm:$0xff]
        %v514 = vld [vmem:[%s3] sm:$0xff]
        %v515 = vld [vmem:[%s3 + $0x8] sm:$0x3]
        %vm516 = vcmask 80896
        %v518 = vsel %vm516, %v401, 0
        %v521 = vsel %vm516, %v402, 0
        %v524 = vsel %vm516, %v403, 0
        %v527 = vsel %vm516, %v404, 0
        %v530 = vsel %vm516, %v405, 0
        %v533 = vsel %vm516, %v406, 0
        %v536 = vsel %vm516, %v407, 0
        %v539 = vsel %vm516, %v408, 0
        %v542 = vsel %vm516, %v409, 0
        %v545 = vsel %vm516, %v410, 0
        %v548 = vsel %vm516, %v411, 0
        %v551 = vsel %vm516, %v412, 0
        %v554 = vsel %vm516, %v413, 0
        %v557 = vsel %vm516, %v414, 0
        %vm559 = vcmask 1041408
        %v561 = vsel %vm559, %v515, 0
        %563 = vmatprep.subr.mxu0 0.0
        %564 = vmatpush1.msra.mxu0 0.0
        %565 = vmatprep.subr.mxu0 0.0
        %566 = vmatpush1.msra.mxu0 0.0
        %567 = vmatprep.subr.mxu0 0.0
        %568 = vmatpush1.msra.mxu0 0.0
        %569 = vmatprep.subr.mxu0 0.0
        %570 = vmatpush1.msra.mxu0 0.0
        %571 = vmatprep.subr.mxu0 0.0
        %572 = vmatpush1.msra.mxu0 0.0
        %573 = vmatprep.subr.mxu0 0.0
        %574 = vmatpush1.msra.mxu0 0.0
        %575 = vmatprep.subr.mxu0 0.0
        %576 = vmatpush1.msra.mxu0 0.0
        %577 = vmatprep.subr.mxu0 0.0
        %578 = vmatpush1.msra.mxu0 0.0
        %579 = vmatprep.subr.mxu0 0.0
        %580 = vmatpush1.msra.mxu0 0.0
        %581 = vmatprep.subr.mxu0 0.0
        %582 = vmatpush1.msra.mxu0 0.0
        %583 = vmatprep.subr.mxu0 0.0
        %584 = vmatpush1.msra.mxu0 0.0
        %585 = vmatprep.subr.mxu0 0.0
        %586 = vmatpush1.msra.mxu0 0.0
        %587 = vmatprep.subr.mxu0 0.0
        %588 = vmatpush1.msra.mxu0 0.0
        %589 = vmatprep.subr.mxu0 0.0
        %590 = vmatpush1.msra.mxu0 0.0
        %591 = vmatprep.subr.mxu0 0.0
        %592 = vmatpush1.msra.mxu0 %v561
        %593 = vmatprep.subr.mxu0 0.0
        %594 = vmatpush1.msra.mxu0 %v514
        %595 = vmatprep.subr.mxu0 0.0
        %596 = vmatpush2.msra.mxu0 0.0
        %597 = vmatprep.subr.mxu0 0.0
        %598 = vmatpush2.msra.mxu0 0.0
        %599 = vmatprep.subr.mxu0 0.0
        %600 = vmatpush2.msra.mxu0 0.0
        %601 = vmatprep.subr.mxu0 0.0
        %602 = vmatpush2.msra.mxu0 0.0
        %603 = vmatprep.subr.mxu0 0.0
        %604 = vmatpush2.msra.mxu0 0.0
        %605 = vmatprep.subr.mxu0 0.0
        %606 = vmatpush2.msra.mxu0 0.0
        %607 = vmatprep.subr.mxu0 0.0
        %608 = vmatpush2.msra.mxu0 0.0
        %609 = vmatprep.subr.mxu0 0.0
        %610 = vmatpush2.msra.mxu0 0.0
        %611 = vmatprep.subr.mxu0 0.0
        %612 = vmatpush2.msra.mxu0 0.0
        %613 = vmatprep.subr.mxu0 0.0
        %614 = vmatpush2.msra.mxu0 0.0
        %615 = vmatprep.subr.mxu0 0.0
        %616 = vmatpush2.msra.mxu0 0.0
        %617 = vmatprep.subr.mxu0 0.0
        %618 = vmatpush2.msra.mxu0 0.0
        %619 = vmatprep.subr.mxu0 0.0
        %620 = vmatpush2.msra.mxu0 0.0
        %621 = vmatprep.subr.mxu0 0.0
        %622 = vmatpush2.msra.mxu0 0.0
        %623 = vmatprep.subr.mxu0 0.0
        %624 = vmatpush2.msra.mxu0 0.0
        %625 = vmatprep.subr.mxu0 0.0
        %626 = vmatpush2.msra.mxu0 0.0
        %627 = vmatprep.mubr.f32.mxu0 0.0
        %628 = vmatmul.mubr.f32.gmra.mxu0 %v518
        %v629 = vpop.f32.mrf.mxu0
        %v630 = vadd.f32 0.0, %v629
        %v631 = vpop.f32.mrf.mxu0
        %632 = vmatprep.mubr.f32.mxu0 0.0
        %633 = vmatmul.mubr.f32.gmra.mxu0 %v521
        %v634 = vpop.f32.mrf.mxu0
        %v635 = vadd.f32 0.0, %v634
        %v636 = vpop.f32.mrf.mxu0
        %637 = vmatprep.mubr.f32.mxu0 0.0
        %638 = vmatmul.mubr.f32.gmra.mxu0 %v524
        %v639 = vpop.f32.mrf.mxu0
        %v640 = vadd.f32 0.0, %v639
        %v641 = vpop.f32.mrf.mxu0
        %642 = vmatprep.mubr.f32.mxu0 0.0
        %643 = vmatmul.mubr.f32.gmra.mxu0 %v527
        %v644 = vpop.f32.mrf.mxu0
        %v645 = vadd.f32 0.0, %v644
        %v646 = vpop.f32.mrf.mxu0
        %647 = vmatprep.mubr.f32.mxu0 0.0
        %648 = vmatmul.mubr.f32.gmra.mxu0 %v530
        %v649 = vpop.f32.mrf.mxu0
        %v650 = vadd.f32 0.0, %v649
        %v651 = vpop.f32.mrf.mxu0
        %652 = vmatprep.mubr.f32.mxu0 0.0
        %653 = vmatmul.mubr.f32.gmra.mxu0 %v533
        %v654 = vpop.f32.mrf.mxu0
        %v655 = vadd.f32 0.0, %v654
        %v656 = vpop.f32.mrf.mxu0
        %657 = vmatprep.mubr.f32.mxu0 0.0
        %658 = vmatmul.mubr.f32.gmra.mxu0 %v536
        %v659 = vpop.f32.mrf.mxu0
        %v660 = vadd.f32 0.0, %v659
        %v661 = vpop.f32.mrf.mxu0
        %662 = vmatprep.mubr.f32.mxu0 0.0
        %663 = vmatmul.mubr.f32.gmra.mxu0 %v539
        %v664 = vpop.f32.mrf.mxu0
        %v665 = vadd.f32 0.0, %v664
        %v666 = vpop.f32.mrf.mxu0
        %667 = vmatprep.mubr.f32.mxu0 0.0
        %668 = vmatmul.mubr.f32.gmra.mxu0 %v542
        %v669 = vpop.f32.mrf.mxu0
        %v670 = vadd.f32 0.0, %v669
        %v671 = vpop.f32.mrf.mxu0
        %672 = vmatprep.mubr.f32.mxu0 0.0
        %673 = vmatmul.mubr.f32.gmra.mxu0 %v545
        %v674 = vpop.f32.mrf.mxu0
        %v675 = vadd.f32 0.0, %v674
        %v676 = vpop.f32.mrf.mxu0
        %677 = vmatprep.mubr.f32.mxu0 0.0
        %678 = vmatmul.mubr.f32.gmra.mxu0 %v548
        %v679 = vpop.f32.mrf.mxu0
        %v680 = vadd.f32 0.0, %v679
        %v681 = vpop.f32.mrf.mxu0
        %682 = vmatprep.mubr.f32.mxu0 0.0
        %683 = vmatmul.mubr.f32.gmra.mxu0 %v551
        %v684 = vpop.f32.mrf.mxu0
        %v685 = vadd.f32 0.0, %v684
        %v686 = vpop.f32.mrf.mxu0
        %687 = vmatprep.mubr.f32.mxu0 0.0
        %688 = vmatmul.mubr.f32.gmra.mxu0 %v554
        %v689 = vpop.f32.mrf.mxu0
        %v690 = vadd.f32 0.0, %v689
        %v691 = vpop.f32.mrf.mxu0
        %692 = vmatprep.mubr.f32.mxu0 0.0
        %693 = vmatmul.mubr.f32.gmra.mxu0 %v557
        %v694 = vpop.f32.mrf.mxu0
        %v695 = vadd.f32 0.0, %v694
        %v696 = vpop.f32.mrf.mxu0
        %697 = vdwg.mxu0
        %vm698 = vcmask 64512
        %v700 = vsel %vm698, %v499, 0
        %v703 = vsel %vm698, %v500, 0
        %v706 = vsel %vm698, %v501, 0
        %v709 = vsel %vm698, %v502, 0
        %v712 = vsel %vm698, %v503, 0
        %v715 = vsel %vm698, %v504, 0
        %v718 = vsel %vm698, %v505, 0
        %v721 = vsel %vm698, %v506, 0
        %v724 = vsel %vm698, %v507, 0
        %v727 = vsel %vm698, %v508, 0
        %v730 = vsel %vm698, %v509, 0
        %v733 = vsel %vm698, %v510, 0
        %v736 = vsel %vm698, %v511, 0
        %v739 = vsel %vm698, %v512, 0
        %741 = vmatprep.subr.mxu0 0.0
        %742 = vmatpush1.msra.mxu0 0.0
        %743 = vmatprep.subr.mxu0 0.0
        %744 = vmatpush1.msra.mxu0 0.0
        %745 = vmatprep.subr.mxu0 0.0
        %746 = vmatpush1.msra.mxu0 0.0
        %747 = vmatprep.subr.mxu0 0.0
        %748 = vmatpush1.msra.mxu0 0.0
        %749 = vmatprep.subr.mxu0 0.0
        %750 = vmatpush1.msra.mxu0 0.0
        %751 = vmatprep.subr.mxu0 0.0
        %752 = vmatpush1.msra.mxu0 0.0
        %753 = vmatprep.subr.mxu0 0.0
        %754 = vmatpush1.msra.mxu0 0.0
        %755 = vmatprep.subr.mxu0 0.0
        %756 = vmatpush1.msra.mxu0 0.0
        %757 = vmatprep.subr.mxu0 0.0
        %758 = vmatpush1.msra.mxu0 0.0
        %759 = vmatprep.subr.mxu0 0.0
        %760 = vmatpush1.msra.mxu0 0.0
        %761 = vmatprep.subr.mxu0 0.0
        %762 = vmatpush1.msra.mxu0 0.0
        %763 = vmatprep.subr.mxu0 0.0
        %764 = vmatpush1.msra.mxu0 0.0
        %765 = vmatprep.subr.mxu0 0.0
        %766 = vmatpush1.msra.mxu0 0.0
        %767 = vmatprep.subr.mxu0 0.0
        %768 = vmatpush1.msra.mxu0 0.0
        %769 = vmatprep.subr.mxu0 0.0
        %770 = vmatpush1.msra.mxu0 0.0
        %771 = vmatprep.subr.mxu0 0.0
        %772 = vmatpush1.msra.mxu0 %v513
        %773 = vmatprep.subr.mxu0 0.0
        %774 = vmatpush2.msra.mxu0 0.0
        %775 = vmatprep.subr.mxu0 0.0
        %776 = vmatpush2.msra.mxu0 0.0
        %777 = vmatprep.subr.mxu0 0.0
        %778 = vmatpush2.msra.mxu0 0.0
        %779 = vmatprep.subr.mxu0 0.0
        %780 = vmatpush2.msra.mxu0 0.0
        %781 = vmatprep.subr.mxu0 0.0
        %782 = vmatpush2.msra.mxu0 0.0
        %783 = vmatprep.subr.mxu0 0.0
        %784 = vmatpush2.msra.mxu0 0.0
        %785 = vmatprep.subr.mxu0 0.0
        %786 = vmatpush2.msra.mxu0 0.0
        %787 = vmatprep.subr.mxu0 0.0
        %788 = vmatpush2.msra.mxu0 0.0
        %789 = vmatprep.subr.mxu0 0.0
        %790 = vmatpush2.msra.mxu0 0.0
        %791 = vmatprep.subr.mxu0 0.0
        %792 = vmatpush2.msra.mxu0 0.0
        %793 = vmatprep.subr.mxu0 0.0
        %794 = vmatpush2.msra.mxu0 0.0
        %795 = vmatprep.subr.mxu0 0.0
        %796 = vmatpush2.msra.mxu0 0.0
        %797 = vmatprep.subr.mxu0 0.0
        %798 = vmatpush2.msra.mxu0 0.0
        %799 = vmatprep.subr.mxu0 0.0
        %800 = vmatpush2.msra.mxu0 0.0
        %801 = vmatprep.subr.mxu0 0.0
        %802 = vmatpush2.msra.mxu0 0.0
        %803 = vmatprep.subr.mxu0 0.0
        %804 = vmatpush2.msra.mxu0 0.0
        %805 = vmatprep.mubr.f32.mxu0 0.0
        %806 = vmatmul.mubr.f32.gmra.mxu0 %v700
        %v807 = vpop.f32.mrf.mxu0
        %v808 = vadd.f32 %v630, %v807
        %v809 = vpop.f32.mrf.mxu0
        %810 = vmatprep.mubr.f32.mxu0 0.0
        %811 = vmatmul.mubr.f32.gmra.mxu0 %v703
        %v812 = vpop.f32.mrf.mxu0
        %v813 = vadd.f32 %v635, %v812
        %v814 = vpop.f32.mrf.mxu0
        %815 = vmatprep.mubr.f32.mxu0 0.0
        %816 = vmatmul.mubr.f32.gmra.mxu0 %v706
        %v817 = vpop.f32.mrf.mxu0
        %v818 = vadd.f32 %v640, %v817
        %v819 = vpop.f32.mrf.mxu0
        %820 = vmatprep.mubr.f32.mxu0 0.0
        %821 = vmatmul.mubr.f32.gmra.mxu0 %v709
        %v822 = vpop.f32.mrf.mxu0
        %v823 = vadd.f32 %v645, %v822
        %v824 = vpop.f32.mrf.mxu0
        %825 = vmatprep.mubr.f32.mxu0 0.0
        %826 = vmatmul.mubr.f32.gmra.mxu0 %v712
        %v827 = vpop.f32.mrf.mxu0
        %v828 = vadd.f32 %v650, %v827
        %v829 = vpop.f32.mrf.mxu0
        %830 = vmatprep.mubr.f32.mxu0 0.0
        %831 = vmatmul.mubr.f32.gmra.mxu0 %v715
        %v832 = vpop.f32.mrf.mxu0
        %v833 = vadd.f32 %v655, %v832
        %v834 = vpop.f32.mrf.mxu0
        %835 = vmatprep.mubr.f32.mxu0 0.0
        %836 = vmatmul.mubr.f32.gmra.mxu0 %v718
        %v837 = vpop.f32.mrf.mxu0
        %v838 = vadd.f32 %v660, %v837
        %v839 = vpop.f32.mrf.mxu0
        %840 = vmatprep.mubr.f32.mxu0 0.0
        %841 = vmatmul.mubr.f32.gmra.mxu0 %v721
        %v842 = vpop.f32.mrf.mxu0
        %v843 = vadd.f32 %v665, %v842
        %v844 = vpop.f32.mrf.mxu0
        %845 = vmatprep.mubr.f32.mxu0 0.0
        %846 = vmatmul.mubr.f32.gmra.mxu0 %v724
        %v847 = vpop.f32.mrf.mxu0
        %v848 = vadd.f32 %v670, %v847
        %v849 = vpop.f32.mrf.mxu0
        %850 = vmatprep.mubr.f32.mxu0 0.0
        %851 = vmatmul.mubr.f32.gmra.mxu0 %v727
        %v852 = vpop.f32.mrf.mxu0
        %v853 = vadd.f32 %v675, %v852
        %v854 = vpop.f32.mrf.mxu0
        %855 = vmatprep.mubr.f32.mxu0 0.0
        %856 = vmatmul.mubr.f32.gmra.mxu0 %v730
        %v857 = vpop.f32.mrf.mxu0
        %v858 = vadd.f32 %v680, %v857
        %v859 = vpop.f32.mrf.mxu0
        %860 = vmatprep.mubr.f32.mxu0 0.0
        %861 = vmatmul.mubr.f32.gmra.mxu0 %v733
        %v862 = vpop.f32.mrf.mxu0
        %v863 = vadd.f32 %v685, %v862
        %v864 = vpop.f32.mrf.mxu0
        %865 = vmatprep.mubr.f32.mxu0 0.0
        %866 = vmatmul.mubr.f32.gmra.mxu0 %v736
        %v867 = vpop.f32.mrf.mxu0
        %v868 = vadd.f32 %v690, %v867
        %v869 = vpop.f32.mrf.mxu0
        %870 = vmatprep.mubr.f32.mxu0 0.0
        %871 = vmatmul.mubr.f32.gmra.mxu0 %v739
        %v872 = vpop.f32.mrf.mxu0
        %v873 = vadd.f32 %v695, %v872
        %v874 = vpop.f32.mrf.mxu0
        %875 = vdwg.mxu0
        %v876 = vld [vmem:[%s4] sm:$0xff]
        %v877 = vld [vmem:[%s4 + $0x8] sm:$0x3]
        %v879 = vsel %vm516, %v485, 0
        %v882 = vsel %vm516, %v486, 0
        %v885 = vsel %vm516, %v487, 0
        %v888 = vsel %vm516, %v488, 0
        %v891 = vsel %vm516, %v489, 0
        %v894 = vsel %vm516, %v490, 0
        %v897 = vsel %vm516, %v491, 0
        %v900 = vsel %vm516, %v492, 0
        %v903 = vsel %vm516, %v493, 0
        %v906 = vsel %vm516, %v494, 0
        %v909 = vsel %vm516, %v495, 0
        %v912 = vsel %vm516, %v496, 0
        %v915 = vsel %vm516, %v497, 0
        %v918 = vsel %vm516, %v498, 0
        %v921 = vsel %vm559, %v877, 0
        %923 = vmatprep.subr.mxu0 0.0
        %924 = vmatpush1.msra.mxu0 0.0
        %925 = vmatprep.subr.mxu0 0.0
        %926 = vmatpush1.msra.mxu0 0.0
        %927 = vmatprep.subr.mxu0 0.0
        %928 = vmatpush1.msra.mxu0 0.0
        %929 = vmatprep.subr.mxu0 0.0
        %930 = vmatpush1.msra.mxu0 0.0
        %931 = vmatprep.subr.mxu0 0.0
        %932 = vmatpush1.msra.mxu0 0.0
        %933 = vmatprep.subr.mxu0 0.0
        %934 = vmatpush1.msra.mxu0 0.0
        %935 = vmatprep.subr.mxu0 0.0
        %936 = vmatpush1.msra.mxu0 0.0
        %937 = vmatprep.subr.mxu0 0.0
        %938 = vmatpush1.msra.mxu0 0.0
        %939 = vmatprep.subr.mxu0 0.0
        %940 = vmatpush1.msra.mxu0 0.0
        %941 = vmatprep.subr.mxu0 0.0
        %942 = vmatpush1.msra.mxu0 0.0
        %943 = vmatprep.subr.mxu0 0.0
        %944 = vmatpush1.msra.mxu0 0.0
        %945 = vmatprep.subr.mxu0 0.0
        %946 = vmatpush1.msra.mxu0 0.0
        %947 = vmatprep.subr.mxu0 0.0
        %948 = vmatpush1.msra.mxu0 0.0
        %949 = vmatprep.subr.mxu0 0.0
        %950 = vmatpush1.msra.mxu0 0.0
        %951 = vmatprep.subr.mxu0 0.0
        %952 = vmatpush1.msra.mxu0 %v921
        %953 = vmatprep.subr.mxu0 0.0
        %954 = vmatpush1.msra.mxu0 %v876
        %955 = vmatprep.subr.mxu0 0.0
        %956 = vmatpush2.msra.mxu0 0.0
        %957 = vmatprep.subr.mxu0 0.0
        %958 = vmatpush2.msra.mxu0 0.0
        %959 = vmatprep.subr.mxu0 0.0
        %960 = vmatpush2.msra.mxu0 0.0
        %961 = vmatprep.subr.mxu0 0.0
        %962 = vmatpush2.msra.mxu0 0.0
        %963 = vmatprep.subr.mxu0 0.0
        %964 = vmatpush2.msra.mxu0 0.0
        %965 = vmatprep.subr.mxu0 0.0
        %966 = vmatpush2.msra.mxu0 0.0
        %967 = vmatprep.subr.mxu0 0.0
        %968 = vmatpush2.msra.mxu0 0.0
        %969 = vmatprep.subr.mxu0 0.0
        %970 = vmatpush2.msra.mxu0 0.0
        %971 = vmatprep.subr.mxu0 0.0
        %972 = vmatpush2.msra.mxu0 0.0
        %973 = vmatprep.subr.mxu0 0.0
        %974 = vmatpush2.msra.mxu0 0.0
        %975 = vmatprep.subr.mxu0 0.0
        %976 = vmatpush2.msra.mxu0 0.0
        %977 = vmatprep.subr.mxu0 0.0
        %978 = vmatpush2.msra.mxu0 0.0
        %979 = vmatprep.subr.mxu0 0.0
        %980 = vmatpush2.msra.mxu0 0.0
        %981 = vmatprep.subr.mxu0 0.0
        %982 = vmatpush2.msra.mxu0 0.0
        %983 = vmatprep.subr.mxu0 0.0
        %984 = vmatpush2.msra.mxu0 0.0
        %985 = vmatprep.subr.mxu0 0.0
        %986 = vmatpush2.msra.mxu0 0.0
        %987 = vmatprep.mubr.f32.mxu0 0.0
        %988 = vmatmul.mubr.f32.gmra.mxu0 %v879
        %v989 = vpop.f32.mrf.mxu0
        %v990 = vadd.f32 0.0, %v989
        %v991 = vpop.f32.mrf.mxu0
        %992 = vmatprep.mubr.f32.mxu0 0.0
        %993 = vmatmul.mubr.f32.gmra.mxu0 %v882
        %v994 = vpop.f32.mrf.mxu0
        %v995 = vadd.f32 0.0, %v994
        %v996 = vpop.f32.mrf.mxu0
        %997 = vmatprep.mubr.f32.mxu0 0.0
        %998 = vmatmul.mubr.f32.gmra.mxu0 %v885
        %v999 = vpop.f32.mrf.mxu0
        %v1000 = vadd.f32 0.0, %v999
        %v1001 = vpop.f32.mrf.mxu0
        %1002 = vmatprep.mubr.f32.mxu0 0.0
        %1003 = vmatmul.mubr.f32.gmra.mxu0 %v888
        %v1004 = vpop.f32.mrf.mxu0
        %v1005 = vadd.f32 0.0, %v1004
        %v1006 = vpop.f32.mrf.mxu0
        %1007 = vmatprep.mubr.f32.mxu0 0.0
        %1008 = vmatmul.mubr.f32.gmra.mxu0 %v891
        %v1009 = vpop.f32.mrf.mxu0
        %v1010 = vadd.f32 0.0, %v1009
        %v1011 = vpop.f32.mrf.mxu0
        %1012 = vmatprep.mubr.f32.mxu0 0.0
        %1013 = vmatmul.mubr.f32.gmra.mxu0 %v894
        %v1014 = vpop.f32.mrf.mxu0
        %v1015 = vadd.f32 0.0, %v1014
        %v1016 = vpop.f32.mrf.mxu0
        %1017 = vmatprep.mubr.f32.mxu0 0.0
        %1018 = vmatmul.mubr.f32.gmra.mxu0 %v897
        %v1019 = vpop.f32.mrf.mxu0
        %v1020 = vadd.f32 0.0, %v1019
        %v1021 = vpop.f32.mrf.mxu0
        %1022 = vmatprep.mubr.f32.mxu0 0.0
        %1023 = vmatmul.mubr.f32.gmra.mxu0 %v900
        %v1024 = vpop.f32.mrf.mxu0
        %v1025 = vadd.f32 0.0, %v1024
        %v1026 = vpop.f32.mrf.mxu0
        %1027 = vmatprep.mubr.f32.mxu0 0.0
        %1028 = vmatmul.mubr.f32.gmra.mxu0 %v903
        %v1029 = vpop.f32.mrf.mxu0
        %v1030 = vadd.f32 0.0, %v1029
        %v1031 = vpop.f32.mrf.mxu0
        %1032 = vmatprep.mubr.f32.mxu0 0.0
        %1033 = vmatmul.mubr.f32.gmra.mxu0 %v906
        %v1034 = vpop.f32.mrf.mxu0
        %v1035 = vadd.f32 0.0, %v1034
        %v1036 = vpop.f32.mrf.mxu0
        %1037 = vmatprep.mubr.f32.mxu0 0.0
        %1038 = vmatmul.mubr.f32.gmra.mxu0 %v909
        %v1039 = vpop.f32.mrf.mxu0
        %v1040 = vadd.f32 0.0, %v1039
        %v1041 = vpop.f32.mrf.mxu0
        %1042 = vmatprep.mubr.f32.mxu0 0.0
        %1043 = vmatmul.mubr.f32.gmra.mxu0 %v912
        %v1044 = vpop.f32.mrf.mxu0
        %v1045 = vadd.f32 0.0, %v1044
        %v1046 = vpop.f32.mrf.mxu0
        %1047 = vmatprep.mubr.f32.mxu0 0.0
        %1048 = vmatmul.mubr.f32.gmra.mxu0 %v915
        %v1049 = vpop.f32.mrf.mxu0
        %v1050 = vadd.f32 0.0, %v1049
        %v1051 = vpop.f32.mrf.mxu0
        %1052 = vmatprep.mubr.f32.mxu0 0.0
        %1053 = vmatmul.mubr.f32.gmra.mxu0 %v918
        %v1054 = vpop.f32.mrf.mxu0
        %v1055 = vadd.f32 0.0, %v1054
        %v1056 = vpop.f32.mrf.mxu0
        %1057 = vdwg.mxu0
        %v1058 = vadd.f32 %v808, %v990
        %v1059 = vadd.f32 %v813, %v995
        %v1060 = vadd.f32 %v818, %v1000
        %v1061 = vadd.f32 %v823, %v1005
        %v1062 = vadd.f32 %v828, %v1010
        %v1063 = vadd.f32 %v833, %v1015
        %v1064 = vadd.f32 %v838, %v1020
        %v1065 = vadd.f32 %v843, %v1025
        %v1066 = vadd.f32 %v848, %v1030
        %v1067 = vadd.f32 %v853, %v1035
        %v1068 = vadd.f32 %v858, %v1040
        %v1069 = vadd.f32 %v863, %v1045
        %v1070 = vadd.f32 %v868, %v1050
        %v1071 = vadd.f32 %v873, %v1055
        %v1072 = vld [vmem:[%s5] sm:$0x1]
        %v1074 = vlaneseq
        %v1075 = vshrl.u32 %v1074, 7
        %v1076 = vsub.s32 0, %v1075
        %v1077 = vrot.slane %v1072, %v1076
        %v1079 = vadd.f32 %v1058, %v1077
        %v1080 = vadd.f32 %v1059, %v1077
        %v1081 = vadd.f32 %v1060, %v1077
        %v1082 = vadd.f32 %v1061, %v1077
        %v1083 = vadd.f32 %v1062, %v1077
        %v1084 = vadd.f32 %v1063, %v1077
        %v1085 = vadd.f32 %v1064, %v1077
        %v1086 = vadd.f32 %v1065, %v1077
        %v1087 = vadd.f32 %v1066, %v1077
        %v1088 = vadd.f32 %v1067, %v1077
        %v1089 = vadd.f32 %v1068, %v1077
        %v1090 = vadd.f32 %v1069, %v1077
        %v1091 = vadd.f32 %v1070, %v1077
        %v1092 = vadd.f32 %v1071, %v1077
        %v1093 = vtanh.pop %v1079
        %v1094 = vtanh.pop %v1080
        %v1095 = vtanh.pop %v1081
        %v1096 = vtanh.pop %v1082
        %v1097 = vtanh.pop %v1083
        %v1098 = vtanh.pop %v1084
        %v1099 = vtanh.pop %v1085
        %v1100 = vtanh.pop %v1086
        %v1101 = vtanh.pop %v1087
        %v1102 = vtanh.pop %v1088
        %v1103 = vtanh.pop %v1089
        %v1104 = vtanh.pop %v1090
        %v1105 = vtanh.pop %v1091
        %v1106 = vtanh.pop %v1092
        %v1107 = vxor.u32 %v1079, 2147483648
        %v1108 = vxor.u32 %v1080, 2147483648
        %v1109 = vxor.u32 %v1081, 2147483648
        %v1110 = vxor.u32 %v1082, 2147483648
        %v1111 = vxor.u32 %v1083, 2147483648
        %v1112 = vxor.u32 %v1084, 2147483648
        %v1113 = vxor.u32 %v1085, 2147483648
        %v1114 = vxor.u32 %v1086, 2147483648
        %v1115 = vxor.u32 %v1087, 2147483648
        %v1116 = vxor.u32 %v1088, 2147483648
        %v1117 = vxor.u32 %v1089, 2147483648
        %v1118 = vxor.u32 %v1090, 2147483648
        %v1119 = vxor.u32 %v1091, 2147483648
        %v1120 = vxor.u32 %v1092, 2147483648
        %v1121 = vmul.f32 %v1107, 1.442695
        %v1122 = vpow.pop %v1121
        %v1123 = vmul.f32 %v1108, 1.442695
        %v1124 = vpow.pop %v1123
        %v1125 = vmul.f32 %v1109, 1.442695
        %v1126 = vpow.pop %v1125
        %v1127 = vmul.f32 %v1110, 1.442695
        %v1128 = vpow.pop %v1127
        %v1129 = vmul.f32 %v1111, 1.442695
        %v1130 = vpow.pop %v1129
        %v1131 = vmul.f32 %v1112, 1.442695
        %v1132 = vpow.pop %v1131
        %v1133 = vmul.f32 %v1113, 1.442695
        %v1134 = vpow.pop %v1133
        %v1135 = vmul.f32 %v1114, 1.442695
        %v1136 = vpow.pop %v1135
        %v1137 = vmul.f32 %v1115, 1.442695
        %v1138 = vpow.pop %v1137
        %v1139 = vmul.f32 %v1116, 1.442695
        %v1140 = vpow.pop %v1139
        %v1141 = vmul.f32 %v1117, 1.442695
        %v1142 = vpow.pop %v1141
        %v1143 = vmul.f32 %v1118, 1.442695
        %v1144 = vpow.pop %v1143
        %v1145 = vmul.f32 %v1119, 1.442695
        %v1146 = vpow.pop %v1145
        %v1147 = vmul.f32 %v1120, 1.442695
        %v1148 = vpow.pop %v1147
        %v1149 = vadd.f32 %v1122, 1.0
        %v1150 = vadd.f32 %v1124, 1.0
        %v1151 = vadd.f32 %v1126, 1.0
        %v1152 = vadd.f32 %v1128, 1.0
        %v1153 = vadd.f32 %v1130, 1.0
        %v1154 = vadd.f32 %v1132, 1.0
        %v1155 = vadd.f32 %v1134, 1.0
        %v1156 = vadd.f32 %v1136, 1.0
        %v1157 = vadd.f32 %v1138, 1.0
        %v1158 = vadd.f32 %v1140, 1.0
        %v1159 = vadd.f32 %v1142, 1.0
        %v1160 = vadd.f32 %v1144, 1.0
        %v1161 = vadd.f32 %v1146, 1.0
        %v1162 = vadd.f32 %v1148, 1.0
        %v1163 = vrcp.pop %v1149
        %v1164 = vmul.f32 1.0, %v1163
        %v1165 = vrcp.pop %v1150
        %v1166 = vmul.f32 1.0, %v1165
        %v1167 = vrcp.pop %v1151
        %v1168 = vmul.f32 1.0, %v1167
        %v1169 = vrcp.pop %v1152
        %v1170 = vmul.f32 1.0, %v1169
        %v1171 = vrcp.pop %v1153
        %v1172 = vmul.f32 1.0, %v1171
        %v1173 = vrcp.pop %v1154
        %v1174 = vmul.f32 1.0, %v1173
        %v1175 = vrcp.pop %v1155
        %v1176 = vmul.f32 1.0, %v1175
        %v1177 = vrcp.pop %v1156
        %v1178 = vmul.f32 1.0, %v1177
        %v1179 = vrcp.pop %v1157
        %v1180 = vmul.f32 1.0, %v1179
        %v1181 = vrcp.pop %v1158
        %v1182 = vmul.f32 1.0, %v1181
        %v1183 = vrcp.pop %v1159
        %v1184 = vmul.f32 1.0, %v1183
        %v1185 = vrcp.pop %v1160
        %v1186 = vmul.f32 1.0, %v1185
        %v1187 = vrcp.pop %v1161
        %v1188 = vmul.f32 1.0, %v1187
        %v1189 = vrcp.pop %v1162
        %v1190 = vmul.f32 1.0, %v1189
        %1205 = vrot.lane.b32.xlu0 %v1093, 96
        %v1206 = vpop.permute.xlu0 %1205
        %1207 = vrot.lane.b32.xlu0 %v1094, 96
        %v1208 = vpop.permute.xlu0 %1207
        %1209 = vrot.lane.b32.xlu0 %v1095, 96
        %v1210 = vpop.permute.xlu0 %1209
        %1211 = vrot.lane.b32.xlu0 %v1096, 96
        %v1212 = vpop.permute.xlu0 %1211
        %1213 = vrot.lane.b32.xlu0 %v1097, 96
        %v1214 = vpop.permute.xlu0 %1213
        %1215 = vrot.lane.b32.xlu0 %v1098, 96
        %v1216 = vpop.permute.xlu0 %1215
        %1217 = vrot.lane.b32.xlu0 %v1099, 96
        %v1218 = vpop.permute.xlu0 %1217
        %1219 = vrot.lane.b32.xlu0 %v1100, 96
        %v1220 = vpop.permute.xlu0 %1219
        %1221 = vrot.lane.b32.xlu0 %v1101, 96
        %v1222 = vpop.permute.xlu0 %1221
        %1223 = vrot.lane.b32.xlu0 %v1102, 96
        %v1224 = vpop.permute.xlu0 %1223
        %1225 = vrot.lane.b32.xlu0 %v1103, 96
        %v1226 = vpop.permute.xlu0 %1225
        %1227 = vrot.lane.b32.xlu0 %v1104, 96
        %v1228 = vpop.permute.xlu0 %1227
        %1229 = vrot.lane.b32.xlu0 %v1105, 96
        %v1230 = vpop.permute.xlu0 %1229
        %1231 = vrot.lane.b32.xlu0 %v1106, 96
        %v1232 = vpop.permute.xlu0 %1231
        %vm1247 = vcmask 261120
        %v1248 = vsel %vm1247, %v1206, 0.0
        %1249 = vadd.xlane.f32.xlu0 %v1248
        %v1250 = vpop.xlane.xlu0 %1249
        %v1251 = vsel %vm1247, %v1208, 0.0
        %1252 = vadd.xlane.f32.xlu0 %v1251
        %v1253 = vpop.xlane.xlu0 %1252
        %v1254 = vsel %vm1247, %v1210, 0.0
        %1255 = vadd.xlane.f32.xlu0 %v1254
        %v1256 = vpop.xlane.xlu0 %1255
        %v1257 = vsel %vm1247, %v1212, 0.0
        %1258 = vadd.xlane.f32.xlu0 %v1257
        %v1259 = vpop.xlane.xlu0 %1258
        %v1260 = vsel %vm1247, %v1214, 0.0
        %1261 = vadd.xlane.f32.xlu0 %v1260
        %v1262 = vpop.xlane.xlu0 %1261
        %v1263 = vsel %vm1247, %v1216, 0.0
        %1264 = vadd.xlane.f32.xlu0 %v1263
        %v1265 = vpop.xlane.xlu0 %1264
        %v1266 = vsel %vm1247, %v1218, 0.0
        %1267 = vadd.xlane.f32.xlu0 %v1266
        %v1268 = vpop.xlane.xlu0 %1267
        %v1269 = vsel %vm1247, %v1220, 0.0
        %1270 = vadd.xlane.f32.xlu0 %v1269
        %v1271 = vpop.xlane.xlu0 %1270
        %v1272 = vsel %vm1247, %v1222, 0.0
        %1273 = vadd.xlane.f32.xlu0 %v1272
        %v1274 = vpop.xlane.xlu0 %1273
        %v1275 = vsel %vm1247, %v1224, 0.0
        %1276 = vadd.xlane.f32.xlu0 %v1275
        %v1277 = vpop.xlane.xlu0 %1276
        %v1278 = vsel %vm1247, %v1226, 0.0
        %1279 = vadd.xlane.f32.xlu0 %v1278
        %v1280 = vpop.xlane.xlu0 %1279
        %v1281 = vsel %vm1247, %v1228, 0.0
        %1282 = vadd.xlane.f32.xlu0 %v1281
        %v1283 = vpop.xlane.xlu0 %1282
        %v1284 = vsel %vm1247, %v1230, 0.0
        %1285 = vadd.xlane.f32.xlu0 %v1284
        %v1286 = vpop.xlane.xlu0 %1285
        %v1287 = vsel %vm1247, %v1232, 0.0
        %1288 = vadd.xlane.f32.xlu0 %v1287
        %v1289 = vpop.xlane.xlu0 %1288
        %v1290 = vrcp.pop 32.0
        %v1291 = vmul.f32 %v1250, %v1290
        %v1292 = vmul.f32 %v1253, %v1290
        %v1293 = vmul.f32 %v1256, %v1290
        %v1294 = vmul.f32 %v1259, %v1290
        %v1295 = vmul.f32 %v1262, %v1290
        %v1296 = vmul.f32 %v1265, %v1290
        %v1297 = vmul.f32 %v1268, %v1290
        %v1298 = vmul.f32 %v1271, %v1290
        %v1299 = vmul.f32 %v1274, %v1290
        %v1300 = vmul.f32 %v1277, %v1290
        %v1301 = vmul.f32 %v1280, %v1290
        %v1302 = vmul.f32 %v1283, %v1290
        %v1303 = vmul.f32 %v1286, %v1290
        %v1304 = vmul.f32 %v1289, %v1290
        %v1305 = vsub.f32 %v1093, %v1291
        %v1306 = vsub.f32 %v1094, %v1292
        %v1307 = vsub.f32 %v1095, %v1293
        %v1308 = vsub.f32 %v1096, %v1294
        %v1309 = vsub.f32 %v1097, %v1295
        %v1310 = vsub.f32 %v1098, %v1296
        %v1311 = vsub.f32 %v1099, %v1297
        %v1312 = vsub.f32 %v1100, %v1298
        %v1313 = vsub.f32 %v1101, %v1299
        %v1314 = vsub.f32 %v1102, %v1300
        %v1315 = vsub.f32 %v1103, %v1301
        %v1316 = vsub.f32 %v1104, %v1302
        %v1317 = vsub.f32 %v1105, %v1303
        %v1318 = vsub.f32 %v1106, %v1304
        %v1319 = vmul.f32 %v1305, %v1305
        %v1320 = vmul.f32 %v1306, %v1306
        %v1321 = vmul.f32 %v1307, %v1307
        %v1322 = vmul.f32 %v1308, %v1308
        %v1323 = vmul.f32 %v1309, %v1309
        %v1324 = vmul.f32 %v1310, %v1310
        %v1325 = vmul.f32 %v1311, %v1311
        %v1326 = vmul.f32 %v1312, %v1312
        %v1327 = vmul.f32 %v1313, %v1313
        %v1328 = vmul.f32 %v1314, %v1314
        %v1329 = vmul.f32 %v1315, %v1315
        %v1330 = vmul.f32 %v1316, %v1316
        %v1331 = vmul.f32 %v1317, %v1317
        %v1332 = vmul.f32 %v1318, %v1318
        %1347 = vrot.lane.b32.xlu0 %v1319, 96
        %v1348 = vpop.permute.xlu0 %1347
        %1349 = vrot.lane.b32.xlu0 %v1320, 96
        %v1350 = vpop.permute.xlu0 %1349
        %1351 = vrot.lane.b32.xlu0 %v1321, 96
        %v1352 = vpop.permute.xlu0 %1351
        %1353 = vrot.lane.b32.xlu0 %v1322, 96
        %v1354 = vpop.permute.xlu0 %1353
        %1355 = vrot.lane.b32.xlu0 %v1323, 96
        %v1356 = vpop.permute.xlu0 %1355
        %1357 = vrot.lane.b32.xlu0 %v1324, 96
        %v1358 = vpop.permute.xlu0 %1357
        %1359 = vrot.lane.b32.xlu0 %v1325, 96
        %v1360 = vpop.permute.xlu0 %1359
        %1361 = vrot.lane.b32.xlu0 %v1326, 96
        %v1362 = vpop.permute.xlu0 %1361
        %1363 = vrot.lane.b32.xlu0 %v1327, 96
        %v1364 = vpop.permute.xlu0 %1363
        %1365 = vrot.lane.b32.xlu0 %v1328, 96
        %v1366 = vpop.permute.xlu0 %1365
        %1367 = vrot.lane.b32.xlu0 %v1329, 96
        %v1368 = vpop.permute.xlu0 %1367
        %1369 = vrot.lane.b32.xlu0 %v1330, 96
        %v1370 = vpop.permute.xlu0 %1369
        %1371 = vrot.lane.b32.xlu0 %v1331, 96
        %v1372 = vpop.permute.xlu0 %1371
        %1373 = vrot.lane.b32.xlu0 %v1332, 96
        %v1374 = vpop.permute.xlu0 %1373
        %v1389 = vsel %vm1247, %v1348, 0.0
        %1390 = vadd.xlane.f32.xlu0 %v1389
        %v1391 = vpop.xlane.xlu0 %1390
        %v1392 = vsel %vm1247, %v1350, 0.0
        %1393 = vadd.xlane.f32.xlu0 %v1392
        %v1394 = vpop.xlane.xlu0 %1393
        %v1395 = vsel %vm1247, %v1352, 0.0
        %1396 = vadd.xlane.f32.xlu0 %v1395
        %v1397 = vpop.xlane.xlu0 %1396
        %v1398 = vsel %vm1247, %v1354, 0.0
        %1399 = vadd.xlane.f32.xlu0 %v1398
        %v1400 = vpop.xlane.xlu0 %1399
        %v1401 = vsel %vm1247, %v1356, 0.0
        %1402 = vadd.xlane.f32.xlu0 %v1401
        %v1403 = vpop.xlane.xlu0 %1402
        %v1404 = vsel %vm1247, %v1358, 0.0
        %1405 = vadd.xlane.f32.xlu0 %v1404
        %v1406 = vpop.xlane.xlu0 %1405
        %v1407 = vsel %vm1247, %v1360, 0.0
        %1408 = vadd.xlane.f32.xlu0 %v1407
        %v1409 = vpop.xlane.xlu0 %1408
        %v1410 = vsel %vm1247, %v1362, 0.0
        %1411 = vadd.xlane.f32.xlu0 %v1410
        %v1412 = vpop.xlane.xlu0 %1411
        %v1413 = vsel %vm1247, %v1364, 0.0
        %1414 = vadd.xlane.f32.xlu0 %v1413
        %v1415 = vpop.xlane.xlu0 %1414
        %v1416 = vsel %vm1247, %v1366, 0.0
        %1417 = vadd.xlane.f32.xlu0 %v1416
        %v1418 = vpop.xlane.xlu0 %1417
        %v1419 = vsel %vm1247, %v1368, 0.0
        %1420 = vadd.xlane.f32.xlu0 %v1419
        %v1421 = vpop.xlane.xlu0 %1420
        %v1422 = vsel %vm1247, %v1370, 0.0
        %1423 = vadd.xlane.f32.xlu0 %v1422
        %v1424 = vpop.xlane.xlu0 %1423
        %v1425 = vsel %vm1247, %v1372, 0.0
        %1426 = vadd.xlane.f32.xlu0 %v1425
        %v1427 = vpop.xlane.xlu0 %1426
        %v1428 = vsel %vm1247, %v1374, 0.0
        %1429 = vadd.xlane.f32.xlu0 %v1428
        %v1430 = vpop.xlane.xlu0 %1429
        %v1431 = vmul.f32 %v1391, %v1290
        %v1432 = vmul.f32 %v1394, %v1290
        %v1433 = vmul.f32 %v1397, %v1290
        %v1434 = vmul.f32 %v1400, %v1290
        %v1435 = vmul.f32 %v1403, %v1290
        %v1436 = vmul.f32 %v1406, %v1290
        %v1437 = vmul.f32 %v1409, %v1290
        %v1438 = vmul.f32 %v1412, %v1290
        %v1439 = vmul.f32 %v1415, %v1290
        %v1440 = vmul.f32 %v1418, %v1290
        %v1441 = vmul.f32 %v1421, %v1290
        %v1442 = vmul.f32 %v1424, %v1290
        %v1443 = vmul.f32 %v1427, %v1290
        %v1444 = vmul.f32 %v1430, %v1290
        %v1445 = vadd.f32 %v1431, 1e-05
        %v1446 = vadd.f32 %v1432, 1e-05
        %v1447 = vadd.f32 %v1433, 1e-05
        %v1448 = vadd.f32 %v1434, 1e-05
        %v1449 = vadd.f32 %v1435, 1e-05
        %v1450 = vadd.f32 %v1436, 1e-05
        %v1451 = vadd.f32 %v1437, 1e-05
        %v1452 = vadd.f32 %v1438, 1e-05
        %v1453 = vadd.f32 %v1439, 1e-05
        %v1454 = vadd.f32 %v1440, 1e-05
        %v1455 = vadd.f32 %v1441, 1e-05
        %v1456 = vadd.f32 %v1442, 1e-05
        %v1457 = vadd.f32 %v1443, 1e-05
        %v1458 = vadd.f32 %v1444, 1e-05
        %v1459 = vrsqrt.pop %v1445
        %v1460 = vrsqrt.pop %v1446
        %v1461 = vrsqrt.pop %v1447
        %v1462 = vrsqrt.pop %v1448
        %v1463 = vrsqrt.pop %v1449
        %v1464 = vrsqrt.pop %v1450
        %v1465 = vrsqrt.pop %v1451
        %v1466 = vrsqrt.pop %v1452
        %v1467 = vrsqrt.pop %v1453
        %v1468 = vrsqrt.pop %v1454
        %v1469 = vrsqrt.pop %v1455
        %v1470 = vrsqrt.pop %v1456
        %v1471 = vrsqrt.pop %v1457
        %v1472 = vrsqrt.pop %v1458
        %v1473 = vmul.f32 %v1305, %v1459
        %v1474 = vmul.f32 %v1306, %v1460
        %v1475 = vmul.f32 %v1307, %v1461
        %v1476 = vmul.f32 %v1308, %v1462
        %v1477 = vmul.f32 %v1309, %v1463
        %v1478 = vmul.f32 %v1310, %v1464
        %v1479 = vmul.f32 %v1311, %v1465
        %v1480 = vmul.f32 %v1312, %v1466
        %v1481 = vmul.f32 %v1313, %v1467
        %v1482 = vmul.f32 %v1314, %v1468
        %v1483 = vmul.f32 %v1315, %v1469
        %v1484 = vmul.f32 %v1316, %v1470
        %v1485 = vmul.f32 %v1317, %v1471
        %v1486 = vmul.f32 %v1318, %v1472
        %1488 = vset.pattern.permute.xlu0 64
        %1489 = vperm.xlu0 %1488, %v1164
        %v1490 = vpop.permute.xlu0 %1489
        %1493 = vset.pattern.permute.xlu0 64
        %1494 = vperm.xlu0 %1493, %v1166
        %v1495 = vpop.permute.xlu0 %1494
        %1498 = vset.pattern.permute.xlu0 64
        %1499 = vperm.xlu0 %1498, %v1168
        %v1500 = vpop.permute.xlu0 %1499
        %1503 = vset.pattern.permute.xlu0 64
        %1504 = vperm.xlu0 %1503, %v1170
        %v1505 = vpop.permute.xlu0 %1504
        %1508 = vset.pattern.permute.xlu0 64
        %1509 = vperm.xlu0 %1508, %v1172
        %v1510 = vpop.permute.xlu0 %1509
        %1513 = vset.pattern.permute.xlu0 64
        %1514 = vperm.xlu0 %1513, %v1174
        %v1515 = vpop.permute.xlu0 %1514
        %1518 = vset.pattern.permute.xlu0 64
        %1519 = vperm.xlu0 %1518, %v1176
        %v1520 = vpop.permute.xlu0 %1519
        %1523 = vset.pattern.permute.xlu0 64
        %1524 = vperm.xlu0 %1523, %v1178
        %v1525 = vpop.permute.xlu0 %1524
        %1528 = vset.pattern.permute.xlu0 64
        %1529 = vperm.xlu0 %1528, %v1180
        %v1530 = vpop.permute.xlu0 %1529
        %1533 = vset.pattern.permute.xlu0 64
        %1534 = vperm.xlu0 %1533, %v1182
        %v1535 = vpop.permute.xlu0 %1534
        %1538 = vset.pattern.permute.xlu0 64
        %1539 = vperm.xlu0 %1538, %v1184
        %v1540 = vpop.permute.xlu0 %1539
        %1543 = vset.pattern.permute.xlu0 64
        %1544 = vperm.xlu0 %1543, %v1186
        %v1545 = vpop.permute.xlu0 %1544
        %1548 = vset.pattern.permute.xlu0 64
        %1549 = vperm.xlu0 %1548, %v1188
        %v1550 = vpop.permute.xlu0 %1549
        %1553 = vset.pattern.permute.xlu0 64
        %1554 = vperm.xlu0 %1553, %v1190
        %v1555 = vpop.permute.xlu0 %1554
        %v1557 = vmul.f32 %v1473, %v1490
        %v1558 = vmul.f32 %v1474, %v1495
        %v1559 = vmul.f32 %v1475, %v1500
        %v1560 = vmul.f32 %v1476, %v1505
        %v1561 = vmul.f32 %v1477, %v1510
        %v1562 = vmul.f32 %v1478, %v1515
        %v1563 = vmul.f32 %v1479, %v1520
        %v1564 = vmul.f32 %v1480, %v1525
        %v1565 = vmul.f32 %v1481, %v1530
        %v1566 = vmul.f32 %v1482, %v1535
        %v1567 = vmul.f32 %v1483, %v1540
        %v1568 = vmul.f32 %v1484, %v1545
        %v1569 = vmul.f32 %v1485, %v1550
        %v1570 = vmul.f32 %v1486, %v1555
        %1585 = vrot.lane.b32.xlu0 %v1557, 96
        %v1586 = vpop.permute.xlu0 %1585
        %1587 = vrot.lane.b32.xlu0 %v1558, 96
        %v1588 = vpop.permute.xlu0 %1587
        %1589 = vrot.lane.b32.xlu0 %v1559, 96
        %v1590 = vpop.permute.xlu0 %1589
        %1591 = vrot.lane.b32.xlu0 %v1560, 96
        %v1592 = vpop.permute.xlu0 %1591
        %1593 = vrot.lane.b32.xlu0 %v1561, 96
        %v1594 = vpop.permute.xlu0 %1593
        %1595 = vrot.lane.b32.xlu0 %v1562, 96
        %v1596 = vpop.permute.xlu0 %1595
        %1597 = vrot.lane.b32.xlu0 %v1563, 96
        %v1598 = vpop.permute.xlu0 %1597
        %1599 = vrot.lane.b32.xlu0 %v1564, 96
        %v1600 = vpop.permute.xlu0 %1599
        %1601 = vrot.lane.b32.xlu0 %v1565, 96
        %v1602 = vpop.permute.xlu0 %1601
        %1603 = vrot.lane.b32.xlu0 %v1566, 96
        %v1604 = vpop.permute.xlu0 %1603
        %1605 = vrot.lane.b32.xlu0 %v1567, 96
        %v1606 = vpop.permute.xlu0 %1605
        %1607 = vrot.lane.b32.xlu0 %v1568, 96
        %v1608 = vpop.permute.xlu0 %1607
        %1609 = vrot.lane.b32.xlu0 %v1569, 96
        %v1610 = vpop.permute.xlu0 %1609
        %1611 = vrot.lane.b32.xlu0 %v1570, 96
        %v1612 = vpop.permute.xlu0 %1611
        %v1627 = vadd.f32 %v1079, %v1586
        %v1628 = vadd.f32 %v1080, %v1588
        %v1629 = vadd.f32 %v1081, %v1590
        %v1630 = vadd.f32 %v1082, %v1592
        %v1631 = vadd.f32 %v1083, %v1594
        %v1632 = vadd.f32 %v1084, %v1596
        %v1633 = vadd.f32 %v1085, %v1598
        %v1634 = vadd.f32 %v1086, %v1600
        %v1635 = vadd.f32 %v1087, %v1602
        %v1636 = vadd.f32 %v1088, %v1604
        %v1637 = vadd.f32 %v1089, %v1606
        %v1638 = vadd.f32 %v1090, %v1608
        %v1639 = vadd.f32 %v1091, %v1610
        %v1640 = vadd.f32 %v1092, %v1612
        %v1641 = vsel %vm1247, %v1627, 0.0
        %1642 = vadd.xlane.f32.xlu0 %v1641
        %v1643 = vpop.xlane.xlu0 %1642
        %v1644 = vsel %vm1247, %v1628, 0.0
        %1645 = vadd.xlane.f32.xlu0 %v1644
        %v1646 = vpop.xlane.xlu0 %1645
        %v1647 = vsel %vm1247, %v1629, 0.0
        %1648 = vadd.xlane.f32.xlu0 %v1647
        %v1649 = vpop.xlane.xlu0 %1648
        %v1650 = vsel %vm1247, %v1630, 0.0
        %1651 = vadd.xlane.f32.xlu0 %v1650
        %v1652 = vpop.xlane.xlu0 %1651
        %v1653 = vsel %vm1247, %v1631, 0.0
        %1654 = vadd.xlane.f32.xlu0 %v1653
        %v1655 = vpop.xlane.xlu0 %1654
        %v1656 = vsel %vm1247, %v1632, 0.0
        %1657 = vadd.xlane.f32.xlu0 %v1656
        %v1658 = vpop.xlane.xlu0 %1657
        %v1659 = vsel %vm1247, %v1633, 0.0
        %1660 = vadd.xlane.f32.xlu0 %v1659
        %v1661 = vpop.xlane.xlu0 %1660
        %v1662 = vsel %vm1247, %v1634, 0.0
        %1663 = vadd.xlane.f32.xlu0 %v1662
        %v1664 = vpop.xlane.xlu0 %1663
        %v1665 = vsel %vm1247, %v1635, 0.0
        %1666 = vadd.xlane.f32.xlu0 %v1665
        %v1667 = vpop.xlane.xlu0 %1666
        %v1668 = vsel %vm1247, %v1636, 0.0
        %1669 = vadd.xlane.f32.xlu0 %v1668
        %v1670 = vpop.xlane.xlu0 %1669
        %v1671 = vsel %vm1247, %v1637, 0.0
        %1672 = vadd.xlane.f32.xlu0 %v1671
        %v1673 = vpop.xlane.xlu0 %1672
        %v1674 = vsel %vm1247, %v1638, 0.0
        %1675 = vadd.xlane.f32.xlu0 %v1674
        %v1676 = vpop.xlane.xlu0 %1675
        %v1677 = vsel %vm1247, %v1639, 0.0
        %1678 = vadd.xlane.f32.xlu0 %v1677
        %v1679 = vpop.xlane.xlu0 %1678
        %v1680 = vsel %vm1247, %v1640, 0.0
        %1681 = vadd.xlane.f32.xlu0 %v1680
        %v1682 = vpop.xlane.xlu0 %1681
        %v1683 = vmul.f32 %v1643, %v1290
        %v1684 = vmul.f32 %v1646, %v1290
        %v1685 = vmul.f32 %v1649, %v1290
        %v1686 = vmul.f32 %v1652, %v1290
        %v1687 = vmul.f32 %v1655, %v1290
        %v1688 = vmul.f32 %v1658, %v1290
        %v1689 = vmul.f32 %v1661, %v1290
        %v1690 = vmul.f32 %v1664, %v1290
        %v1691 = vmul.f32 %v1667, %v1290
        %v1692 = vmul.f32 %v1670, %v1290
        %v1693 = vmul.f32 %v1673, %v1290
        %v1694 = vmul.f32 %v1676, %v1290
        %v1695 = vmul.f32 %v1679, %v1290
        %v1696 = vmul.f32 %v1682, %v1290
        %v1697 = vsub.f32 %v1627, %v1683
        %v1698 = vsub.f32 %v1628, %v1684
        %v1699 = vsub.f32 %v1629, %v1685
        %v1700 = vsub.f32 %v1630, %v1686
        %v1701 = vsub.f32 %v1631, %v1687
        %v1702 = vsub.f32 %v1632, %v1688
        %v1703 = vsub.f32 %v1633, %v1689
        %v1704 = vsub.f32 %v1634, %v1690
        %v1705 = vsub.f32 %v1635, %v1691
        %v1706 = vsub.f32 %v1636, %v1692
        %v1707 = vsub.f32 %v1637, %v1693
        %v1708 = vsub.f32 %v1638, %v1694
        %v1709 = vsub.f32 %v1639, %v1695
        %v1710 = vsub.f32 %v1640, %v1696
        %v1711 = vmul.f32 %v1697, %v1697
        %v1712 = vmul.f32 %v1698, %v1698
        %v1713 = vmul.f32 %v1699, %v1699
        %v1714 = vmul.f32 %v1700, %v1700
        %v1715 = vmul.f32 %v1701, %v1701
        %v1716 = vmul.f32 %v1702, %v1702
        %v1717 = vmul.f32 %v1703, %v1703
        %v1718 = vmul.f32 %v1704, %v1704
        %v1719 = vmul.f32 %v1705, %v1705
        %v1720 = vmul.f32 %v1706, %v1706
        %v1721 = vmul.f32 %v1707, %v1707
        %v1722 = vmul.f32 %v1708, %v1708
        %v1723 = vmul.f32 %v1709, %v1709
        %v1724 = vmul.f32 %v1710, %v1710
        %v1725 = vsel %vm1247, %v1711, 0.0
        %1726 = vadd.xlane.f32.xlu0 %v1725
        %v1727 = vpop.xlane.xlu0 %1726
        %v1728 = vsel %vm1247, %v1712, 0.0
        %1729 = vadd.xlane.f32.xlu0 %v1728
        %v1730 = vpop.xlane.xlu0 %1729
        %v1731 = vsel %vm1247, %v1713, 0.0
        %1732 = vadd.xlane.f32.xlu0 %v1731
        %v1733 = vpop.xlane.xlu0 %1732
        %v1734 = vsel %vm1247, %v1714, 0.0
        %1735 = vadd.xlane.f32.xlu0 %v1734
        %v1736 = vpop.xlane.xlu0 %1735
        %v1737 = vsel %vm1247, %v1715, 0.0
        %1738 = vadd.xlane.f32.xlu0 %v1737
        %v1739 = vpop.xlane.xlu0 %1738
        %v1740 = vsel %vm1247, %v1716, 0.0
        %1741 = vadd.xlane.f32.xlu0 %v1740
        %v1742 = vpop.xlane.xlu0 %1741
        %v1743 = vsel %vm1247, %v1717, 0.0
        %1744 = vadd.xlane.f32.xlu0 %v1743
        %v1745 = vpop.xlane.xlu0 %1744
        %v1746 = vsel %vm1247, %v1718, 0.0
        %1747 = vadd.xlane.f32.xlu0 %v1746
        %v1748 = vpop.xlane.xlu0 %1747
        %v1749 = vsel %vm1247, %v1719, 0.0
        %1750 = vadd.xlane.f32.xlu0 %v1749
        %v1751 = vpop.xlane.xlu0 %1750
        %v1752 = vsel %vm1247, %v1720, 0.0
        %1753 = vadd.xlane.f32.xlu0 %v1752
        %v1754 = vpop.xlane.xlu0 %1753
        %v1755 = vsel %vm1247, %v1721, 0.0
        %1756 = vadd.xlane.f32.xlu0 %v1755
        %v1757 = vpop.xlane.xlu0 %1756
        %v1758 = vsel %vm1247, %v1722, 0.0
        %1759 = vadd.xlane.f32.xlu0 %v1758
        %v1760 = vpop.xlane.xlu0 %1759
        %v1761 = vsel %vm1247, %v1723, 0.0
        %1762 = vadd.xlane.f32.xlu0 %v1761
        %v1763 = vpop.xlane.xlu0 %1762
        %v1764 = vsel %vm1247, %v1724, 0.0
        %1765 = vadd.xlane.f32.xlu0 %v1764
        %v1766 = vpop.xlane.xlu0 %1765
        %v1767 = vmul.f32 %v1727, %v1290
        %v1768 = vmul.f32 %v1730, %v1290
        %v1769 = vmul.f32 %v1733, %v1290
        %v1770 = vmul.f32 %v1736, %v1290
        %v1771 = vmul.f32 %v1739, %v1290
        %v1772 = vmul.f32 %v1742, %v1290
        %v1773 = vmul.f32 %v1745, %v1290
        %v1774 = vmul.f32 %v1748, %v1290
        %v1775 = vmul.f32 %v1751, %v1290
        %v1776 = vmul.f32 %v1754, %v1290
        %v1777 = vmul.f32 %v1757, %v1290
        %v1778 = vmul.f32 %v1760, %v1290
        %v1779 = vmul.f32 %v1763, %v1290
        %v1780 = vmul.f32 %v1766, %v1290
        %v1781 = vadd.f32 %v1767, 1e-05
        %v1782 = vadd.f32 %v1768, 1e-05
        %v1783 = vadd.f32 %v1769, 1e-05
        %v1784 = vadd.f32 %v1770, 1e-05
        %v1785 = vadd.f32 %v1771, 1e-05
        %v1786 = vadd.f32 %v1772, 1e-05
        %v1787 = vadd.f32 %v1773, 1e-05
        %v1788 = vadd.f32 %v1774, 1e-05
        %v1789 = vadd.f32 %v1775, 1e-05
        %v1790 = vadd.f32 %v1776, 1e-05
        %v1791 = vadd.f32 %v1777, 1e-05
        %v1792 = vadd.f32 %v1778, 1e-05
        %v1793 = vadd.f32 %v1779, 1e-05
        %v1794 = vadd.f32 %v1780, 1e-05
        %v1795 = vrsqrt.pop %v1781
        %v1796 = vrsqrt.pop %v1782
        %v1797 = vrsqrt.pop %v1783
        %v1798 = vrsqrt.pop %v1784
        %v1799 = vrsqrt.pop %v1785
        %v1800 = vrsqrt.pop %v1786
        %v1801 = vrsqrt.pop %v1787
        %v1802 = vrsqrt.pop %v1788
        %v1803 = vrsqrt.pop %v1789
        %v1804 = vrsqrt.pop %v1790
        %v1805 = vrsqrt.pop %v1791
        %v1806 = vrsqrt.pop %v1792
        %v1807 = vrsqrt.pop %v1793
        %v1808 = vrsqrt.pop %v1794
        %v1809 = vmul.f32 %v1697, %v1795
        %v1810 = vmul.f32 %v1698, %v1796
        %v1811 = vmul.f32 %v1699, %v1797
        %v1812 = vmul.f32 %v1700, %v1798
        %v1813 = vmul.f32 %v1701, %v1799
        %v1814 = vmul.f32 %v1702, %v1800
        %v1815 = vmul.f32 %v1703, %v1801
        %v1816 = vmul.f32 %v1704, %v1802
        %v1817 = vmul.f32 %v1705, %v1803
        %v1818 = vmul.f32 %v1706, %v1804
        %v1819 = vmul.f32 %v1707, %v1805
        %v1820 = vmul.f32 %v1708, %v1806
        %v1821 = vmul.f32 %v1709, %v1807
        %v1822 = vmul.f32 %v1710, %v1808
        %1823 = vst.msk [vmem:[%s281] sm:$0xff] %vm1247, %v1809
        %1824 = vst.msk [vmem:[%s281 + $0x8] sm:$0xff] %vm1247, %v1810
        %1825 = vst.msk [vmem:[%s281 + $0x10] sm:$0xff] %vm1247, %v1811
        %1826 = vst.msk [vmem:[%s281 + $0x18] sm:$0xff] %vm1247, %v1812
        %1827 = vst.msk [vmem:[%s281 + $0x20] sm:$0xff] %vm1247, %v1813
        %1828 = vst.msk [vmem:[%s281 + $0x28] sm:$0xff] %vm1247, %v1814
        %1829 = vst.msk [vmem:[%s281 + $0x30] sm:$0xff] %vm1247, %v1815
        %1830 = vst.msk [vmem:[%s281 + $0x38] sm:$0xff] %vm1247, %v1816
        %1831 = vst.msk [vmem:[%s281 + $0x40] sm:$0xff] %vm1247, %v1817
        %1832 = vst.msk [vmem:[%s281 + $0x48] sm:$0xff] %vm1247, %v1818
        %1833 = vst.msk [vmem:[%s281 + $0x50] sm:$0xff] %vm1247, %v1819
        %1834 = vst.msk [vmem:[%s281 + $0x58] sm:$0xff] %vm1247, %v1820
        %1835 = vst.msk [vmem:[%s281 + $0x60] sm:$0xff] %vm1247, %v1821
        %1836 = vst.msk [vmem:[%s281 + $0x68] sm:$0xff] %vm1247, %v1822
        %s1837 = sand.u32 %s161, 1
        %s1838 = sand.u32 %s161, 1
        %s1839 = smul.addr %s1838, 112
        %s1840 = scalar_lea.vmem [#allocation2], %s1839
        // Predicated region
        $region45: #{tpu_custom_call.1} parent=43 // pred_check
          %p1841 = pneg %p171
        $region46: #{tpu_custom_call.1} parent=43 // pred_check_branch
          %1843 = sbr.rel (%p1841) target = $region48
        $region47: #{tpu_custom_call.1} parent=43 // pred_region
          %s1844 = smul.u32 14, %s17
          %s1845 = ssub.s32 25, %s1844
          %p1846 = scmp.lt.s32.totalorder %s1845, 14
          %s1847 = scalar_select %p1846, %s1845, 14
          %s1848 = smul.u32 128, %s1847
          %p1849 = scmp.ne.s32.totalorder 0, %s1848
          %s1850 = smul.addr %s1844, 8
          %s1851 = scalar_lea.vmem %s6, %s1850
          // Predicated region
          $region49: #{tpu_custom_call.1} parent=47 // pred_check
            %p1852 = pneg %p1849
          $region50: #{tpu_custom_call.1} parent=47 // pred_check_branch
            %1854 = sbr.rel (%p1852) target = $region52
          $region51: #{tpu_custom_call.1} parent=47 // pred_region
            // Predicated region
            $region53: #{tpu_custom_call.1} parent=51 // pred_check
              _
            $region54: #{tpu_custom_call.1} parent=51 // pred_check_branch
              %1856 = sbr.rel (0) target = $region56
            $region55: #{tpu_custom_call.1} parent=51 // pred_region
              // Predicated region
              $region75: #{tpu_custom_call.1} parent=55 // pred_check
                _
              $region76: #{tpu_custom_call.1} parent=55 // pred_check_branch
                %1933 = sbr.rel (0) target = $region78
              $region77: #{tpu_custom_call.1} parent=55 // pred_region
                %s1934 = sdiv.u32.pop %s1847, 14
                %s1935 = srem.u32.pop %s1847, 14
                // While loop
                $region79: #{tpu_custom_call.1} parent=77 // loop_pre_header
                  _
                $region80: #{tpu_custom_call.1} parent=77 // loop_header
                  %s1937 = sphi 0, %s1939
                  %p1938 = scmp.ge.s32.totalorder %s1937, %s1934
                  %s1942 = sphi 0, %s1975
                  %s1943 = sphi %s1840, %s1978
                  %s1944 = sphi %s1851, %s1979
                $region81: #{tpu_custom_call.1} parent=77 // loop_header_branch
                  %1941 = sbr.rel (%p1938) target = $region85
                $region82: #{tpu_custom_call.1} parent=77 // loop_body
                  %v1945 = vld [vmem:[%s1943] sm:$0xff]
                  %1946 = vst [vmem:[%s1944] sm:$0xff] %v1945
                  %v1947 = vld [vmem:[%s1943 + $0x8] sm:$0xff]
                  %1948 = vst [vmem:[%s1944 + $0x8] sm:$0xff] %v1947
                  %v1949 = vld [vmem:[%s1943 + $0x10] sm:$0xff]
                  %1950 = vst [vmem:[%s1944 + $0x10] sm:$0xff] %v1949
                  %v1951 = vld [vmem:[%s1943 + $0x18] sm:$0xff]
                  %1952 = vst [vmem:[%s1944 + $0x18] sm:$0xff] %v1951
                  %v1953 = vld [vmem:[%s1943 + $0x20] sm:$0xff]
                  %1954 = vst [vmem:[%s1944 + $0x20] sm:$0xff] %v1953
                  %v1955 = vld [vmem:[%s1943 + $0x28] sm:$0xff]
                  %1956 = vst [vmem:[%s1944 + $0x28] sm:$0xff] %v1955
                  %v1957 = vld [vmem:[%s1943 + $0x30] sm:$0xff]
                  %1958 = vst [vmem:[%s1944 + $0x30] sm:$0xff] %v1957
                  %v1959 = vld [vmem:[%s1943 + $0x38] sm:$0xff]
                  %1960 = vst [vmem:[%s1944 + $0x38] sm:$0xff] %v1959
                  %v1961 = vld [vmem:[%s1943 + $0x40] sm:$0xff]
                  %1962 = vst [vmem:[%s1944 + $0x40] sm:$0xff] %v1961
                  %v1963 = vld [vmem:[%s1943 + $0x48] sm:$0xff]
                  %1964 = vst [vmem:[%s1944 + $0x48] sm:$0xff] %v1963
                  %v1965 = vld [vmem:[%s1943 + $0x50] sm:$0xff]
                  %1966 = vst [vmem:[%s1944 + $0x50] sm:$0xff] %v1965
                  %v1967 = vld [vmem:[%s1943 + $0x58] sm:$0xff]
                  %1968 = vst [vmem:[%s1944 + $0x58] sm:$0xff] %v1967
                  %v1969 = vld [vmem:[%s1943 + $0x60] sm:$0xff]
                  %1970 = vst [vmem:[%s1944 + $0x60] sm:$0xff] %v1969
                  %v1971 = vld [vmem:[%s1943 + $0x68] sm:$0xff]
                  %1972 = vst [vmem:[%s1944 + $0x68] sm:$0xff] %v1971
                  %s1973 = sadd.s32 1, %s1942
                  %p1974 = scmp.ge.s32.totalorder %s1973, %s1934
                  %s1975 = scalar_select %p1974, 0, %s1973
                  %s1976 = smul.u32 %s1975, 112
                  %s1977 = smul.u32 %s1975, 112
                  %s1978 = scalar_lea.vmem %s1840, %s1976 [#allocation2]
                  %s1979 = scalar_lea.vmem %s1851, %s1977
                $region83: #{tpu_custom_call.1} parent=77 // loop_footer
                  %s1939 = sadd.s32 %s1937, 1
                $region84: #{tpu_custom_call.1} parent=77 // loop_footer_branch
                  %1936 = sbr.rel target = $region80
                $region85: #{tpu_custom_call.1} parent=77 // loop_exit
                  _
                %s1980 = sdiv.u32.pop %s1847, 14
                %s1981 = srem.u32.pop %s1847, 14
                %s1982 = smul.u32 %s1980, 14
                %s1983 = smul.u32 8, %s1982
                %s1984 = scalar_lea.vmem %s1840, %s1983 [#allocation2]
                %s1985 = smul.u32 8, %s1982
                %s1986 = scalar_lea.vmem %s1851, %s1985
                // While loop
                $region86: #{tpu_custom_call.1} parent=77 // loop_pre_header
                  _
                $region87: #{tpu_custom_call.1} parent=77 // loop_header
                  %s1988 = sphi 0, %s1990
                  %p1989 = scmp.ge.s32.totalorder %s1988, %s1981
                  %s1993 = sphi 0, %s2000
                  %s1994 = sphi %s1984, %s2003
                  %s1995 = sphi %s1986, %s2004
                $region88: #{tpu_custom_call.1} parent=77 // loop_header_branch
                  %1992 = sbr.rel (%p1989) target = $region92
                $region89: #{tpu_custom_call.1} parent=77 // loop_body
                  %v1996 = vld [vmem:[%s1994] sm:$0xff]
                  %1997 = vst [vmem:[%s1995] sm:$0xff] %v1996
                  %s1998 = sadd.s32 1, %s1993
                  %p1999 = scmp.ge.s32.totalorder %s1998, %s1981
                  %s2000 = scalar_select %p1999, 0, %s1998
                  %s2001 = smul.u32 %s2000, 8
                  %s2002 = smul.u32 %s2000, 8
                  %s2003 = scalar_lea.vmem %s1984, %s2001 [#allocation2]
                  %s2004 = scalar_lea.vmem %s1986, %s2002
                $region90: #{tpu_custom_call.1} parent=77 // loop_footer
                  %s1990 = sadd.s32 %s1988, 1
                $region91: #{tpu_custom_call.1} parent=77 // loop_footer_branch
                  %1987 = sbr.rel target = $region87
                $region92: #{tpu_custom_call.1} parent=77 // loop_exit
                  _
              $region78: #{tpu_custom_call.1} parent=55 // pred_fallthru
                _
              // Predicated region
              $region93: #{tpu_custom_call.1} parent=55 // pred_check
                _
              $region94: #{tpu_custom_call.1} parent=55 // pred_check_branch
                %2006 = sbr.rel target = $region96
              $region95: #{tpu_custom_call.1} parent=55 // pred_region
                _
              $region96: #{tpu_custom_call.1} parent=55 // pred_fallthru
                _
            $region56: #{tpu_custom_call.1} parent=51 // pred_fallthru
              _
            // Predicated region
            $region57: #{tpu_custom_call.1} parent=51 // pred_check
              _
            $region58: #{tpu_custom_call.1} parent=51 // pred_check_branch
              %1858 = sbr.rel target = $region60
            $region59: #{tpu_custom_call.1} parent=51 // pred_region
              %s1860 = ssub.s32 256, 1
              %s1861 = sdiv.u32.pop %s1847, 14
              %s1862 = srem.u32.pop %s1847, 14
              // While loop
              $region61: #{tpu_custom_call.1} parent=59 // loop_pre_header
                _
              $region62: #{tpu_custom_call.1} parent=59 // loop_header
                %s1864 = sphi 0, %s1866
                %p1865 = scmp.ge.s32.totalorder %s1864, %s1861
                %s1869 = sphi 0, %s1902
                %s1870 = sphi %s1840, %s1905
                %s1871 = sphi %s1851, %s1906
              $region63: #{tpu_custom_call.1} parent=59 // loop_header_branch
                %1868 = sbr.rel (%p1865) target = $region67
              $region64: #{tpu_custom_call.1} parent=59 // loop_body
                %v1872 = vld [vmem:[%s1870] sm:%s1860]
                %1873 = vst [vmem:[%s1871] sm:%s1860] %v1872
                %v1874 = vld [vmem:[%s1870 + $0x8] sm:%s1860]
                %1875 = vst [vmem:[%s1871 + $0x8] sm:%s1860] %v1874
                %v1876 = vld [vmem:[%s1870 + $0x10] sm:%s1860]
                %1877 = vst [vmem:[%s1871 + $0x10] sm:%s1860] %v1876
                %v1878 = vld [vmem:[%s1870 + $0x18] sm:%s1860]
                %1879 = vst [vmem:[%s1871 + $0x18] sm:%s1860] %v1878
                %v1880 = vld [vmem:[%s1870 + $0x20] sm:%s1860]
                %1881 = vst [vmem:[%s1871 + $0x20] sm:%s1860] %v1880
                %v1882 = vld [vmem:[%s1870 + $0x28] sm:%s1860]
                %1883 = vst [vmem:[%s1871 + $0x28] sm:%s1860] %v1882
                %v1884 = vld [vmem:[%s1870 + $0x30] sm:%s1860]
                %1885 = vst [vmem:[%s1871 + $0x30] sm:%s1860] %v1884
                %v1886 = vld [vmem:[%s1870 + $0x38] sm:%s1860]
                %1887 = vst [vmem:[%s1871 + $0x38] sm:%s1860] %v1886
                %v1888 = vld [vmem:[%s1870 + $0x40] sm:%s1860]
                %1889 = vst [vmem:[%s1871 + $0x40] sm:%s1860] %v1888
                %v1890 = vld [vmem:[%s1870 + $0x48] sm:%s1860]
                %1891 = vst [vmem:[%s1871 + $0x48] sm:%s1860] %v1890
                %v1892 = vld [vmem:[%s1870 + $0x50] sm:%s1860]
                %1893 = vst [vmem:[%s1871 + $0x50] sm:%s1860] %v1892
                %v1894 = vld [vmem:[%s1870 + $0x58] sm:%s1860]
                %1895 = vst [vmem:[%s1871 + $0x58] sm:%s1860] %v1894
                %v1896 = vld [vmem:[%s1870 + $0x60] sm:%s1860]
                %1897 = vst [vmem:[%s1871 + $0x60] sm:%s1860] %v1896
                %v1898 = vld [vmem:[%s1870 + $0x68] sm:%s1860]
                %1899 = vst [vmem:[%s1871 + $0x68] sm:%s1860] %v1898
                %s1900 = sadd.s32 1, %s1869
                %p1901 = scmp.ge.s32.totalorder %s1900, %s1861
                %s1902 = scalar_select %p1901, 0, %s1900
                %s1903 = smul.u32 %s1902, 112
                %s1904 = smul.u32 %s1902, 112
                %s1905 = scalar_lea.vmem %s1840, %s1903 [#allocation2]
                %s1906 = scalar_lea.vmem %s1851, %s1904
              $region65: #{tpu_custom_call.1} parent=59 // loop_footer
                %s1866 = sadd.s32 %s1864, 1
              $region66: #{tpu_custom_call.1} parent=59 // loop_footer_branch
                %1863 = sbr.rel target = $region62
              $region67: #{tpu_custom_call.1} parent=59 // loop_exit
                _
              %s1907 = sdiv.u32.pop %s1847, 14
              %s1908 = srem.u32.pop %s1847, 14
              %s1909 = smul.u32 %s1907, 14
              %s1910 = smul.u32 8, %s1909
              %s1911 = scalar_lea.vmem %s1840, %s1910 [#allocation2]
              %s1912 = smul.u32 8, %s1909
              %s1913 = scalar_lea.vmem %s1851, %s1912
              // While loop
              $region68: #{tpu_custom_call.1} parent=59 // loop_pre_header
                _
              $region69: #{tpu_custom_call.1} parent=59 // loop_header
                %s1915 = sphi 0, %s1917
                %p1916 = scmp.ge.s32.totalorder %s1915, %s1908
                %s1920 = sphi 0, %s1927
                %s1921 = sphi %s1911, %s1930
                %s1922 = sphi %s1913, %s1931
              $region70: #{tpu_custom_call.1} parent=59 // loop_header_branch
                %1919 = sbr.rel (%p1916) target = $region74
              $region71: #{tpu_custom_call.1} parent=59 // loop_body
                %v1923 = vld [vmem:[%s1921] sm:%s1860]
                %1924 = vst [vmem:[%s1922] sm:%s1860] %v1923
                %s1925 = sadd.s32 1, %s1920
                %p1926 = scmp.ge.s32.totalorder %s1925, %s1908
                %s1927 = scalar_select %p1926, 0, %s1925
                %s1928 = smul.u32 %s1927, 8
                %s1929 = smul.u32 %s1927, 8
                %s1930 = scalar_lea.vmem %s1911, %s1928 [#allocation2]
                %s1931 = scalar_lea.vmem %s1913, %s1929
              $region72: #{tpu_custom_call.1} parent=59 // loop_footer
                %s1917 = sadd.s32 %s1915, 1
              $region73: #{tpu_custom_call.1} parent=59 // loop_footer_branch
                %1914 = sbr.rel target = $region69
              $region74: #{tpu_custom_call.1} parent=59 // loop_exit
                _
            $region60: #{tpu_custom_call.1} parent=51 // pred_fallthru
              _
          $region52: #{tpu_custom_call.1} parent=47 // pred_fallthru
            _
          %2007 = vnop
        $region48: #{tpu_custom_call.1} parent=43 // pred_fallthru
          _
      $region44: #{tpu_custom_call.1} parent=5 // pred_fallthru
        _
      %p2008 = scmp.le.s32.totalorder 2, %s12
      // Predicated region
      $region97: #{tpu_custom_call.1} parent=5 // pred_check
        %p2009 = pneg %p2008
      $region98: #{tpu_custom_call.1} parent=5 // pred_check_branch
        %2011 = sbr.rel (%p2009) target = $region100
      $region99: #{tpu_custom_call.1} parent=5 // pred_region
        %s2012 = ssub.s32 %s12, 2
        // Predicated region
        $region101: #{tpu_custom_call.1} parent=99 // pred_check
          %p2013 = pneg %p177
        $region102: #{tpu_custom_call.1} parent=99 // pred_check_branch
          %2015 = sbr.rel (%p2013) target = $region104
        $region103: #{tpu_custom_call.1} parent=99 // pred_region
          %s2016 = sand.u32 %s162, 1
          %s2017 = sand.u32 %s162, 1
          %s2018 = smul.addr %s2017, 112
          %s2019 = scalar_lea.vmem [#allocation2], %s2018
        $region104: #{tpu_custom_call.1} parent=99 // pred_fallthru
          _
      $region100: #{tpu_custom_call.1} parent=5 // pred_fallthru
        _
    $region6: #{tpu_custom_call.1} parent=1 // loop_footer
      %s16 = sadd.s32 1, %s12
    $region7: #{tpu_custom_call.1} parent=1 // loop_footer_branch
      %11 = sbr.rel target = $region3
    $region8: #{tpu_custom_call.1} parent=1 // loop_exit
      _

</llo_original>
